<compile_context>
chip_gen: v7x
topology: tpu7x:2x2x1
jax: 0.10.0
libtpu: 0.0.40
codegen_flags: <defaults>
</compile_context>

<pallas_src>
import functools

import jax
import jax.numpy as jnp
from jax import lax
from jax.experimental import pallas as pl
from jax.experimental.pallas import tpu as pltpu


def _sparse_attn_kernel(w_ref, attn_ref, out_ref, *, ks, sub_rows):
    """Fused multi-scale top-k softmax.

    w_ref   : (n_scales,) f32 in SMEM (per-scale weights, duplicates merged,
              ks ascending).
    attn_ref: (block_rows, C) f32 in VMEM.
    out_ref : (block_rows, C) f32 in VMEM.
    """
    block_rows, C = attn_ref.shape
    n_sub = block_rows // sub_rows
    n_scales = len(ks)

    def body(s, carry):
        r0 = pl.multiple_of(s * sub_rows, sub_rows)
        x = attn_ref[pl.ds(r0, sub_rows), :]                    # (S, C)

        # rank[r, i] = #{j : x[r, j] > x[r, i]}; top-k membership <=> rank < k.
        rank = jnp.zeros_like(x)
        for j in range(C):                                      # C small & static
            rank = rank + (x[:, j:j + 1] > x).astype(x.dtype)

        # Single max / single exp serves every scale (k >= 1 keeps the max).
        m = jnp.max(x, axis=-1, keepdims=True)                  # (S, 1)
        e = jnp.exp(x - m)                                      # (S, C)

        # out[i] = e[i] * sum_{scales with k > rank[i]} w_k / s_k.
        # Build the cumulative per-rank-bucket coefficient from the largest k
        # down; each element picks up every scale that keeps it.
        coef = jnp.zeros_like(x)
        cum = jnp.zeros((sub_rows, 1), x.dtype)
        for i in range(n_scales - 1, -1, -1):
            keep = rank < float(ks[i])                          # (S, C) mask
            s_i = jnp.sum(jnp.where(keep, e, 0.0),
                          axis=-1, keepdims=True)               # (S, 1)
            cum = cum + w_ref[i] * pl.reciprocal(s_i)           # exact 1/s
            coef = jnp.where(keep, cum, coef)

        out_ref[pl.ds(r0, sub_rows), :] = e * coef
        return carry

    lax.fori_loop(0, n_sub, body, 0)


def _choose_tiling(M, C, sub_rows=256, target_bytes=1 << 20):
    """Pick (block_rows, sub_rows, grid): ~1 MiB pipelined blocks, an in-kernel
    sub-chunk size that keeps per-op vreg counts modest, and >= 2 grid steps
    whenever M allows (v7x dual-TC + keeps the pipeline alive)."""
    target_rows = max(sub_rows, (target_bytes // (4 * C)) // sub_rows * sub_rows)
    n_blocks = pl.cdiv(M, target_rows)
    if n_blocks == 1 and M >= 16:
        n_blocks = 2
    block_rows = pl.cdiv(M, n_blocks)
    if block_rows >= sub_rows:
        block_rows = pl.cdiv(block_rows, sub_rows) * sub_rows
    else:
        block_rows = pl.cdiv(block_rows, 8) * 8
        if block_rows > M:
            block_rows = M            # full-extent block is always legal
        sub_rows = block_rows
    grid = pl.cdiv(M, block_rows)     # ragged tail handled by Pallas padding
    return int(block_rows), int(sub_rows), int(grid)


def multiscale_topk_sparse_attention(attn, weights):
    """attn: (b, nh, C, C) f32;  weights: (4,) f32 -> (b, nh, C, C) f32."""
    b, nh, C, C2 = attn.shape
    assert C == C2 and C >= 2

    # DRSformer scales; merge duplicates (trace-time) and sum their weights.
    ks_all = (int(C / 2), int(C * 2 / 3), int(C * 3 / 4), int(C * 4 / 5))
    groups = {}
    for idx, k in enumerate(ks_all):
        groups.setdefault(k, []).append(idx)
    ks = tuple(sorted(groups))
    w_merged = jnp.stack(
        [sum(weights[i] for i in groups[k]) for k in ks]).astype(jnp.float32)

    M = b * nh * C
    x2d = attn.reshape(M, C)
    block_rows, sub_rows, grid_rows = _choose_tiling(M, C)
    assert block_rows % sub_rows == 0

    kernel = functools.partial(_sparse_attn_kernel, ks=ks, sub_rows=sub_rows)
    cost = pl.CostEstimate(
        flops=int(M * C * (2 * C + 16)),          # rank loop dominates
        transcendentals=int(M * C),               # one exp per element (fused)
        bytes_accessed=int(2 * M * C * 4 + 4 * len(ks)),
    )

    out2d = pl.pallas_call(
        kernel,
        out_shape=jax.ShapeDtypeStruct((M, C), attn.dtype),
        grid_spec=pltpu.PrefetchScalarGridSpec(
            num_scalar_prefetch=0,
            grid=(grid_rows,),
            in_specs=[
                pl.BlockSpec(memory_space=pltpu.MemorySpace.SMEM),   # weights
                pl.BlockSpec((block_rows, C), lambda i: (i, 0)),     # attn rows
            ],
            out_specs=pl.BlockSpec((block_rows, C), lambda i: (i, 0)),
        ),
        compiler_params=pltpu.CompilerParams(
            dimension_semantics=("parallel",),
            vmem_limit_bytes=32 * 1024 * 1024,
        ),
        cost_estimate=cost,
    )(w_merged, x2d)
    return out2d.reshape(b, nh, C, C)


def _reference(attn, weights):
    """Pure-JAX reference (threshold form of topk masking; original 4 scales)."""
    C = attn.shape[-1]
    ks = (int(C / 2), int(C * 2 / 3), int(C * 3 / 4), int(C * 4 / 5))
    out = jnp.zeros_like(attn)
    for i, k in enumerate(ks):
        thresh = lax.top_k(attn, k)[0][..., -1:]
        masked = jnp.where(attn >= thresh, attn, -jnp.inf)
        out = out + jax.nn.softmax(masked, axis=-1) * weights[i]
    return out


if __name__ == "__main__":
    key = jax.random.PRNGKey(0)
    b, nh, C = 2, 4, 16
    attn = jax.random.normal(key, (b, nh, C, C), dtype=jnp.float32)
    # Deterministic parameter init, matching nn.Parameter(torch.tensor([0.2])) x4.
    weights = jnp.array([0.2, 0.2, 0.2, 0.2], dtype=jnp.float32)

    out = multiscale_topk_sparse_attention(attn, weights)
    jax.block_until_ready(out)

    ref = _reference(attn, weights)
    assert out.shape == (b, nh, C, C)
    assert jnp.allclose(out, ref, atol=1e-5, rtol=1e-5)
    print("KERNEL_OK")
</pallas_src>

<mosaic_0001>
module attributes {stable_mosaic.version = 11 : i64} {
  func.func @_sparse_attn_kernel(%arg0: i32, %arg1: memref<3xf32, #tpu.memory_space<smem>>, %arg2: memref<64x16xf32, #tpu.memory_space<vmem>>, %arg3: memref<64x16xf32, #tpu.memory_space<vmem>>) attributes {dimension_semantics = [#tpu.dimension_semantics<parallel>], iteration_bounds = array<i64: 2>, scalar_prefetch = 0 : i64, scratch_operands = 0 : i64, tpu.core_type = #tpu.core_type<tc>, window_params = [{transform_indices = @transform_0, window_bounds = array<i64: 3>}, {transform_indices = @transform_1, window_bounds = array<i64: 64, 16>}, {transform_indices = @transform_2, window_bounds = array<i64: 64, 16>}]} {
    %c0_i32 = arith.constant 0 : i32
    %c64_i32 = arith.constant 64 : i32
    %0 = arith.muli %c0_i32, %c64_i32 : i32
    %1 = tpu.assume_multiple %0, 64 : i32
    %2 = arith.index_cast %1 : i32 to index
    %c0 = arith.constant 0 : index
    %3 = vector.load %arg2[%2, %c0] : memref<64x16xf32, #tpu.memory_space<vmem>>, vector<64x16xf32>
    %cst = arith.constant 0.000000e+00 : f32
    %4 = vector.broadcast %cst : f32 to vector<64x16xf32>
    %5 = vector.extract_strided_slice %3 {offsets = [0, 0], sizes = [64, 1], strides = [1, 1]} : vector<64x16xf32> to vector<64x1xf32>
    %6 = vector.broadcast %5 : vector<64x1xf32> to vector<64x16xf32>
    %7 = arith.cmpf ogt, %6, %3 : vector<64x16xf32>
    %8 = arith.extui %7 : vector<64x16xi1> to vector<64x16xi32>
    %9 = arith.sitofp %8 : vector<64x16xi32> to vector<64x16xf32>
    %10 = arith.addf %4, %9 : vector<64x16xf32>
    %11 = vector.extract_strided_slice %3 {offsets = [0, 1], sizes = [64, 1], strides = [1, 1]} : vector<64x16xf32> to vector<64x1xf32>
    %12 = vector.broadcast %11 : vector<64x1xf32> to vector<64x16xf32>
    %13 = arith.cmpf ogt, %12, %3 : vector<64x16xf32>
    %14 = arith.extui %13 : vector<64x16xi1> to vector<64x16xi32>
    %15 = arith.sitofp %14 : vector<64x16xi32> to vector<64x16xf32>
    %16 = arith.addf %10, %15 : vector<64x16xf32>
    %17 = vector.extract_strided_slice %3 {offsets = [0, 2], sizes = [64, 1], strides = [1, 1]} : vector<64x16xf32> to vector<64x1xf32>
    %18 = vector.broadcast %17 : vector<64x1xf32> to vector<64x16xf32>
    %19 = arith.cmpf ogt, %18, %3 : vector<64x16xf32>
    %20 = arith.extui %19 : vector<64x16xi1> to vector<64x16xi32>
    %21 = arith.sitofp %20 : vector<64x16xi32> to vector<64x16xf32>
    %22 = arith.addf %16, %21 : vector<64x16xf32>
    %23 = vector.extract_strided_slice %3 {offsets = [0, 3], sizes = [64, 1], strides = [1, 1]} : vector<64x16xf32> to vector<64x1xf32>
    %24 = vector.broadcast %23 : vector<64x1xf32> to vector<64x16xf32>
    %25 = arith.cmpf ogt, %24, %3 : vector<64x16xf32>
    %26 = arith.extui %25 : vector<64x16xi1> to vector<64x16xi32>
    %27 = arith.sitofp %26 : vector<64x16xi32> to vector<64x16xf32>
    %28 = arith.addf %22, %27 : vector<64x16xf32>
    %29 = vector.extract_strided_slice %3 {offsets = [0, 4], sizes = [64, 1], strides = [1, 1]} : vector<64x16xf32> to vector<64x1xf32>
    %30 = vector.broadcast %29 : vector<64x1xf32> to vector<64x16xf32>
    %31 = arith.cmpf ogt, %30, %3 : vector<64x16xf32>
    %32 = arith.extui %31 : vector<64x16xi1> to vector<64x16xi32>
    %33 = arith.sitofp %32 : vector<64x16xi32> to vector<64x16xf32>
    %34 = arith.addf %28, %33 : vector<64x16xf32>
    %35 = vector.extract_strided_slice %3 {offsets = [0, 5], sizes = [64, 1], strides = [1, 1]} : vector<64x16xf32> to vector<64x1xf32>
    %36 = vector.broadcast %35 : vector<64x1xf32> to vector<64x16xf32>
    %37 = arith.cmpf ogt, %36, %3 : vector<64x16xf32>
    %38 = arith.extui %37 : vector<64x16xi1> to vector<64x16xi32>
    %39 = arith.sitofp %38 : vector<64x16xi32> to vector<64x16xf32>
    %40 = arith.addf %34, %39 : vector<64x16xf32>
    %41 = vector.extract_strided_slice %3 {offsets = [0, 6], sizes = [64, 1], strides = [1, 1]} : vector<64x16xf32> to vector<64x1xf32>
    %42 = vector.broadcast %41 : vector<64x1xf32> to vector<64x16xf32>
    %43 = arith.cmpf ogt, %42, %3 : vector<64x16xf32>
    %44 = arith.extui %43 : vector<64x16xi1> to vector<64x16xi32>
    %45 = arith.sitofp %44 : vector<64x16xi32> to vector<64x16xf32>
    %46 = arith.addf %40, %45 : vector<64x16xf32>
    %47 = vector.extract_strided_slice %3 {offsets = [0, 7], sizes = [64, 1], strides = [1, 1]} : vector<64x16xf32> to vector<64x1xf32>
    %48 = vector.broadcast %47 : vector<64x1xf32> to vector<64x16xf32>
    %49 = arith.cmpf ogt, %48, %3 : vector<64x16xf32>
    %50 = arith.extui %49 : vector<64x16xi1> to vector<64x16xi32>
    %51 = arith.sitofp %50 : vector<64x16xi32> to vector<64x16xf32>
    %52 = arith.addf %46, %51 : vector<64x16xf32>
    %53 = vector.extract_strided_slice %3 {offsets = [0, 8], sizes = [64, 1], strides = [1, 1]} : vector<64x16xf32> to vector<64x1xf32>
    %54 = vector.broadcast %53 : vector<64x1xf32> to vector<64x16xf32>
    %55 = arith.cmpf ogt, %54, %3 : vector<64x16xf32>
    %56 = arith.extui %55 : vector<64x16xi1> to vector<64x16xi32>
    %57 = arith.sitofp %56 : vector<64x16xi32> to vector<64x16xf32>
    %58 = arith.addf %52, %57 : vector<64x16xf32>
    %59 = vector.extract_strided_slice %3 {offsets = [0, 9], sizes = [64, 1], strides = [1, 1]} : vector<64x16xf32> to vector<64x1xf32>
    %60 = vector.broadcast %59 : vector<64x1xf32> to vector<64x16xf32>
    %61 = arith.cmpf ogt, %60, %3 : vector<64x16xf32>
    %62 = arith.extui %61 : vector<64x16xi1> to vector<64x16xi32>
    %63 = arith.sitofp %62 : vector<64x16xi32> to vector<64x16xf32>
    %64 = arith.addf %58, %63 : vector<64x16xf32>
    %65 = vector.extract_strided_slice %3 {offsets = [0, 10], sizes = [64, 1], strides = [1, 1]} : vector<64x16xf32> to vector<64x1xf32>
    %66 = vector.broadcast %65 : vector<64x1xf32> to vector<64x16xf32>
    %67 = arith.cmpf ogt, %66, %3 : vector<64x16xf32>
    %68 = arith.extui %67 : vector<64x16xi1> to vector<64x16xi32>
    %69 = arith.sitofp %68 : vector<64x16xi32> to vector<64x16xf32>
    %70 = arith.addf %64, %69 : vector<64x16xf32>
    %71 = vector.extract_strided_slice %3 {offsets = [0, 11], sizes = [64, 1], strides = [1, 1]} : vector<64x16xf32> to vector<64x1xf32>
    %72 = vector.broadcast %71 : vector<64x1xf32> to vector<64x16xf32>
    %73 = arith.cmpf ogt, %72, %3 : vector<64x16xf32>
    %74 = arith.extui %73 : vector<64x16xi1> to vector<64x16xi32>
    %75 = arith.sitofp %74 : vector<64x16xi32> to vector<64x16xf32>
    %76 = arith.addf %70, %75 : vector<64x16xf32>
    %77 = vector.extract_strided_slice %3 {offsets = [0, 12], sizes = [64, 1], strides = [1, 1]} : vector<64x16xf32> to vector<64x1xf32>
    %78 = vector.broadcast %77 : vector<64x1xf32> to vector<64x16xf32>
    %79 = arith.cmpf ogt, %78, %3 : vector<64x16xf32>
    %80 = arith.extui %79 : vector<64x16xi1> to vector<64x16xi32>
    %81 = arith.sitofp %80 : vector<64x16xi32> to vector<64x16xf32>
    %82 = arith.addf %76, %81 : vector<64x16xf32>
    %83 = vector.extract_strided_slice %3 {offsets = [0, 13], sizes = [64, 1], strides = [1, 1]} : vector<64x16xf32> to vector<64x1xf32>
    %84 = vector.broadcast %83 : vector<64x1xf32> to vector<64x16xf32>
    %85 = arith.cmpf ogt, %84, %3 : vector<64x16xf32>
    %86 = arith.extui %85 : vector<64x16xi1> to vector<64x16xi32>
    %87 = arith.sitofp %86 : vector<64x16xi32> to vector<64x16xf32>
    %88 = arith.addf %82, %87 : vector<64x16xf32>
    %89 = vector.extract_strided_slice %3 {offsets = [0, 14], sizes = [64, 1], strides = [1, 1]} : vector<64x16xf32> to vector<64x1xf32>
    %90 = vector.broadcast %89 : vector<64x1xf32> to vector<64x16xf32>
    %91 = arith.cmpf ogt, %90, %3 : vector<64x16xf32>
    %92 = arith.extui %91 : vector<64x16xi1> to vector<64x16xi32>
    %93 = arith.sitofp %92 : vector<64x16xi32> to vector<64x16xf32>
    %94 = arith.addf %88, %93 : vector<64x16xf32>
    %95 = vector.extract_strided_slice %3 {offsets = [0, 15], sizes = [64, 1], strides = [1, 1]} : vector<64x16xf32> to vector<64x1xf32>
    %96 = vector.broadcast %95 : vector<64x1xf32> to vector<64x16xf32>
    %97 = arith.cmpf ogt, %96, %3 : vector<64x16xf32>
    %98 = arith.extui %97 : vector<64x16xi1> to vector<64x16xi32>
    %99 = arith.sitofp %98 : vector<64x16xi32> to vector<64x16xf32>
    %100 = arith.addf %94, %99 : vector<64x16xf32>
    %cst_0 = arith.constant dense<0xFF800000> : vector<64xf32>
    %101 = vector.multi_reduction <maximumf>, %3, %cst_0 [1] : vector<64x16xf32> to vector<64xf32>
    %102 = vector.shape_cast %101 : vector<64xf32> to vector<64x1xf32>
    %103 = vector.broadcast %102 : vector<64x1xf32> to vector<64x16xf32>
    %104 = arith.subf %3, %103 : vector<64x16xf32>
    %105 = math.exp %104 : vector<64x16xf32>
    %cst_1 = arith.constant 0.000000e+00 : f32
    %106 = vector.broadcast %cst_1 : f32 to vector<64x16xf32>
    %cst_2 = arith.constant 0.000000e+00 : f32
    %107 = vector.broadcast %cst_2 : f32 to vector<64x1xf32>
    %cst_3 = arith.constant 1.200000e+01 : f32
    %108 = vector.broadcast %cst_3 : f32 to vector<64x16xf32>
    %109 = arith.cmpf olt, %100, %108 : vector<64x16xf32>
    %cst_4 = arith.constant 0.000000e+00 : f32
    %110 = vector.broadcast %cst_4 : f32 to vector<64x16xf32>
    %111 = arith.select %109, %105, %110 : vector<64x16xi1>, vector<64x16xf32>
    %cst_5 = arith.constant dense<0.000000e+00> : vector<64xf32>
    %112 = vector.multi_reduction <add>, %111, %cst_5 [1] : vector<64x16xf32> to vector<64xf32>
    %113 = vector.shape_cast %112 : vector<64xf32> to vector<64x1xf32>
    %c2 = arith.constant 2 : index
    %114 = memref.load %arg1[%c2] : memref<3xf32, #tpu.memory_space<smem>>
    %115 = tpu.reciprocal %113 : vector<64x1xf32> -> vector<64x1xf32>
    %116 = vector.broadcast %114 : f32 to vector<64x1xf32>
    %117 = arith.mulf %116, %115 : vector<64x1xf32>
    %118 = arith.addf %107, %117 : vector<64x1xf32>
    %119 = vector.shape_cast %118 : vector<64x1xf32> to vector<64x1xf32>
    %120 = vector.broadcast %119 : vector<64x1xf32> to vector<64x16xf32>
    %121 = arith.select %109, %120, %106 : vector<64x16xi1>, vector<64x16xf32>
    %cst_6 = arith.constant 1.000000e+01 : f32
    %122 = vector.broadcast %cst_6 : f32 to vector<64x16xf32>
    %123 = arith.cmpf olt, %100, %122 : vector<64x16xf32>
    %cst_7 = arith.constant 0.000000e+00 : f32
    %124 = vector.broadcast %cst_7 : f32 to vector<64x16xf32>
    %125 = arith.select %123, %105, %124 : vector<64x16xi1>, vector<64x16xf32>
    %cst_8 = arith.constant dense<0.000000e+00> : vector<64xf32>
    %126 = vector.multi_reduction <add>, %125, %cst_8 [1] : vector<64x16xf32> to vector<64xf32>
    %127 = vector.shape_cast %126 : vector<64xf32> to vector<64x1xf32>
    %c1 = arith.constant 1 : index
    %128 = memref.load %arg1[%c1] : memref<3xf32, #tpu.memory_space<smem>>
    %129 = tpu.reciprocal %127 : vector<64x1xf32> -> vector<64x1xf32>
    %130 = vector.broadcast %128 : f32 to vector<64x1xf32>
    %131 = arith.mulf %130, %129 : vector<64x1xf32>
    %132 = arith.addf %118, %131 : vector<64x1xf32>
    %133 = vector.shape_cast %132 : vector<64x1xf32> to vector<64x1xf32>
    %134 = vector.broadcast %133 : vector<64x1xf32> to vector<64x16xf32>
    %135 = arith.select %123, %134, %121 : vector<64x16xi1>, vector<64x16xf32>
    %cst_9 = arith.constant 8.000000e+00 : f32
    %136 = vector.broadcast %cst_9 : f32 to vector<64x16xf32>
    %137 = arith.cmpf olt, %100, %136 : vector<64x16xf32>
    %cst_10 = arith.constant 0.000000e+00 : f32
    %138 = vector.broadcast %cst_10 : f32 to vector<64x16xf32>
    %139 = arith.select %137, %105, %138 : vector<64x16xi1>, vector<64x16xf32>
    %cst_11 = arith.constant dense<0.000000e+00> : vector<64xf32>
    %140 = vector.multi_reduction <add>, %139, %cst_11 [1] : vector<64x16xf32> to vector<64xf32>
    %141 = vector.shape_cast %140 : vector<64xf32> to vector<64x1xf32>
    %c0_12 = arith.constant 0 : index
    %142 = memref.load %arg1[%c0_12] : memref<3xf32, #tpu.memory_space<smem>>
    %143 = tpu.reciprocal %141 : vector<64x1xf32> -> vector<64x1xf32>
    %144 = vector.broadcast %142 : f32 to vector<64x1xf32>
    %145 = arith.mulf %144, %143 : vector<64x1xf32>
    %146 = arith.addf %132, %145 : vector<64x1xf32>
    %147 = vector.shape_cast %146 : vector<64x1xf32> to vector<64x1xf32>
    %148 = vector.broadcast %147 : vector<64x1xf32> to vector<64x16xf32>
    %149 = arith.select %137, %148, %135 : vector<64x16xi1>, vector<64x16xf32>
    %150 = arith.mulf %105, %149 : vector<64x16xf32>
    %151 = arith.index_cast %1 : i32 to index
    %c0_13 = arith.constant 0 : index
    %152 = vector.load %arg3[%151, %c0_13] : memref<64x16xf32, #tpu.memory_space<vmem>>, vector<64x16xf32>
    tpu.vector_store %arg3[%151, %c0_13], %150 {strides = array<i32>} : memref<64x16xf32, #tpu.memory_space<vmem>>, vector<64x16xf32>,
    %c1_i32 = arith.constant 1 : i32
    return
  }
  func.func @transform_0(%arg0: i32) -> i32 {
    %c0_i32 = arith.constant 0 : i32
    %c0_i32_0 = arith.constant 0 : i32
    return %c0_i32 : i32
  }
  func.func @transform_1(%arg0: i32) -> (i32, i32) {
    %c0_i32 = arith.constant 0 : i32
    %c0_i32_0 = arith.constant 0 : i32
    return %arg0, %c0_i32 : i32, i32
  }
  func.func @transform_2(%arg0: i32) -> (i32, i32) {
    %c0_i32 = arith.constant 0 : i32
    %c0_i32_0 = arith.constant 0 : i32
    return %arg0, %c0_i32 : i32, i32
  }
}

</mosaic_0001>

<llo_original>
// kernel: tpu_custom_call.1
$region0: #{tpu_custom_call.1}
  #allocation0 [shape = 'u32[]', space=smem, size = 0x4, offset = 0x4, fixed_abs, tag = 'smem constant byte address 0x4 - core index']
  #allocation1 [shape = 'u32[144,128]{1,0:T(1,128)}', space=vmem, size = 0x12000, scoped, tag = 'internal scratch']
  %s0 = inlined_call_operand.vmem [shape: f32[3], index: 0, kind: input, shape index: {}]
  %s1 = inlined_call_operand.vmem [shape: f32[128,16], index: 1, kind: input, shape index: {}]
  %s2 = inlined_call_operand.vmem [shape: f32[128,16], index: 2, kind: output, shape index: {}]
  %s3 = sld [smem:[#allocation0]]
  $region45: #{tpu_custom_call.1} parent=0
    _
  %s5 = ssub.s32 1, %s3
  %s6 = scalar_select 0, %s5, %s3
  $region1: #{tpu_custom_call.1} parent=0
    #allocation2 [shape = 'u8[512]{0}', space=smem, size = 0x200, scoped, tag = 'input window, operand 0, single buffered']
    #allocation3 [shape = 's32[2]{0}', space=sflag, size = 0x8, scoped, tag = 'scoped memory for tpu_custom_call.1']
    %7 = vsyncpa [#allocation3], 0
    loop: start=0, step=1, limit=4
    $region2: #{tpu_custom_call.1} parent=1 // loop_pre_header
      _
    $region3: #{tpu_custom_call.1} parent=1 // loop_header
      %s9 = sphi 0, %s13
      %p10 = scmp.ge.s32.totalorder %s9, 4
      %s17 = sphi 0, %s17
      %s19 = sphi 0, %s17
      %s20 = sphi 0, %s19
      %s34 = sphi 0, %s20
      %s40 = sphi 0, %s42
      %s43 = sphi 0, %s40
      %s44 = sphi 0, %s43
      %s60 = sphi 0, %s44
      %s66 = sphi 0, %s68
      %s69 = sphi 0, %s66
      %s70 = sphi 0, %s69
      %s86 = sphi 0, %s70
    $region4: #{tpu_custom_call.1} parent=1 // loop_header_branch
      %12 = sbr.rel (%p10) target = $region8
    $region5: #{tpu_custom_call.1} parent=1 // loop_body
      %s14 = ssub.s32 %s9, 1
      %s15 = ssub.s32 %s9, 2
      %s16 = sadd.s32 %s9, 1
      %s18 = sadd.s32 %s17, 1
      %p21 = scmp.eq.s32.totalorder %s9, 1
      %p22 = scmp.ne.s32.totalorder %s17, %s19
      %p23 = scmp.eq.s32.totalorder %s9, 0
      %p24 = por %p22, %p23
      %p25 = scmp.ne.s32.totalorder %s17, %s19
      %p26 = scmp.eq.s32.totalorder %s14, 1
      %p27 = por %p25, %p26
      %p28 = scmp.ne.s32.totalorder %s19, %s20
      %p29 = scmp.eq.s32.totalorder %s14, 0
      %p30 = por %p28, %p29
      %p31 = scmp.ne.s32.totalorder %s19, %s20
      %p32 = scmp.eq.s32.totalorder %s15, 1
      %p33 = por %p31, %p32
      %p35 = scmp.ne.s32.totalorder %s20, %s34
      %p36 = scmp.eq.s32.totalorder %s15, 0
      %p37 = por %p35, %p36
      %s38 = ssub.s32 %s9, %s16
      %p39 = scmp.eq.s32.totalorder %s38, 0
      %s41 = sadd.s32 %s40, 1
      %s42 = scalar_select %p39, %s40, %s41
      %p45 = pneg %p39
      %p46 = scmp.eq.s32.totalorder %s9, 1
      %p47 = por %p45, %p46
      %p48 = scmp.ne.s32.totalorder %s40, %s43
      %p49 = scmp.eq.s32.totalorder %s9, 0
      %p50 = por %p48, %p49
      %p51 = scmp.ne.s32.totalorder %s40, %s43
      %p52 = scmp.eq.s32.totalorder %s14, 1
      %p53 = por %p51, %p52
      %p54 = scmp.ne.s32.totalorder %s43, %s44
      %p55 = scmp.eq.s32.totalorder %s14, 0
      %p56 = por %p54, %p55
      %p57 = scmp.ne.s32.totalorder %s43, %s44
      %p58 = scmp.eq.s32.totalorder %s15, 1
      %p59 = por %p57, %p58
      %p61 = scmp.ne.s32.totalorder %s44, %s60
      %p62 = scmp.eq.s32.totalorder %s15, 0
      %p63 = por %p61, %p62
      %s64 = ssub.s32 %s9, %s16
      %p65 = scmp.eq.s32.totalorder %s64, 0
      %s67 = sadd.s32 %s66, 1
      %s68 = scalar_select %p65, %s66, %s67
      %p71 = pneg %p65
      %p72 = scmp.eq.s32.totalorder %s9, 1
      %p73 = por %p71, %p72
      %p74 = scmp.ne.s32.totalorder %s66, %s69
      %p75 = scmp.eq.s32.totalorder %s9, 0
      %p76 = por %p74, %p75
      %p77 = scmp.ne.s32.totalorder %s66, %s69
      %p78 = scmp.eq.s32.totalorder %s14, 1
      %p79 = por %p77, %p78
      %p80 = scmp.ne.s32.totalorder %s69, %s70
      %p81 = scmp.eq.s32.totalorder %s14, 0
      %p82 = por %p80, %p81
      %p83 = scmp.ne.s32.totalorder %s69, %s70
      %p84 = scmp.eq.s32.totalorder %s15, 1
      %p85 = por %p83, %p84
      %p87 = scmp.ne.s32.totalorder %s70, %s86
      %p88 = scmp.eq.s32.totalorder %s15, 0
      %p89 = por %p87, %p88
      %p90 = scmp.le.s32.totalorder 1, %s9
      %p91 = scmp.lt.s32.totalorder %s9, 3
      %p92 = pnand %p90, %p91
      %p93 = pneg %p92
      // Predicated region
      $region9: #{tpu_custom_call.1} parent=5 // pred_check
        _
      $region10: #{tpu_custom_call.1} parent=5 // pred_check_branch
        %95 = sbr.rel (%p92) target = $region12
      $region11: #{tpu_custom_call.1} parent=5 // pred_region
        %s96 = ssub.s32 %s9, 1
        // Predicated region
        $region13: #{tpu_custom_call.1} parent=11 // pred_check
          %p97 = pneg %p30
        $region14: #{tpu_custom_call.1} parent=11 // pred_check_branch
          %99 = sbr.rel (%p97) target = $region16
        $region15: #{tpu_custom_call.1} parent=11 // pred_region
          %s101 = ssub.s32 16, 16
          %102 = vsyncadd [#allocation3], %s101
          %s104 = sshll.u32 %s0, 4
          %s105 = int_to_ptr.vmem [resolvable:$true] %s104
          %107 = dma.vmem_to_smem %s105, 16, [#allocation2], [#allocation3]
        $region16: #{tpu_custom_call.1} parent=11 // pred_fallthru
          _
      $region12: #{tpu_custom_call.1} parent=5 // pred_fallthru
        _
      %p108 = scmp.lt.s32.totalorder %s9, 2
      // Predicated region
      $region17: #{tpu_custom_call.1} parent=5 // pred_check
        %p109 = pneg %p108
      $region18: #{tpu_custom_call.1} parent=5 // pred_check_branch
        %111 = sbr.rel (%p109) target = $region20
      $region19: #{tpu_custom_call.1} parent=5 // pred_region
        // Predicated region
        $region21: #{tpu_custom_call.1} parent=19 // pred_check
          %p112 = pneg %p50
        $region22: #{tpu_custom_call.1} parent=19 // pred_check_branch
          %114 = sbr.rel (%p112) target = $region24
        $region23: #{tpu_custom_call.1} parent=19 // pred_region
          %s115 = smul.u32 8, %s9
          %p116 = scmp.lt.s32.totalorder %s115, 15
          %s117 = scalar_select %p116, %s115, 15
          %s118 = smul.addr %s117, 8
          %s119 = scalar_lea.vmem %s1, %s118
          %s120 = smul.u32 8, %s9
        $region24: #{tpu_custom_call.1} parent=19 // pred_fallthru
          _
      $region20: #{tpu_custom_call.1} parent=5 // pred_fallthru
        _
      %p121 = scmp.le.s32.totalorder 1, %s9
      %p122 = scmp.lt.s32.totalorder %s9, 3
      %p123 = pnand %p121, %p122
      %p124 = pneg %p123
      // Predicated region
      $region25: #{tpu_custom_call.1} parent=5 // pred_check
        _
      $region26: #{tpu_custom_call.1} parent=5 // pred_check_branch
        %126 = sbr.rel (%p123) target = $region28
      $region27: #{tpu_custom_call.1} parent=5 // pred_region
        %s127 = ssub.s32 %s9, 1
        // Predicated region
        $region29: #{tpu_custom_call.1} parent=27 // pred_check
          %p128 = pneg %p30
        $region30: #{tpu_custom_call.1} parent=27 // pred_check_branch
          %130 = sbr.rel (%p128) target = $region32
        $region31: #{tpu_custom_call.1} parent=27 // pred_region
          %131 = dma.done [#allocation3], 16
        $region32: #{tpu_custom_call.1} parent=27 // pred_fallthru
          _
        %132 = sfence
        %p133 = pneg %p30
        %p134 = pneg %p27
        %s135 = smul.u32 8, %s14
        %p136 = scmp.lt.s32.totalorder %s135, 15
        %s137 = scalar_select %p136, %s135, 15
        %s138 = smul.addr %s137, 8
        %s139 = scalar_lea.vmem %s1, %s138
        %p140 = pneg %p56
        %p141 = pneg %p53
        %p142 = pneg %p82
        %p143 = pneg %p79
        %s144 = smul.u32 8, %s14
        %p145 = scmp.lt.s32.totalorder %s144, 15
        %s146 = scalar_select %p145, %s144, 15
        %s147 = smul.addr %s146, 8
        %s148 = scalar_lea.vmem %s2, %s147
        %s149 = smul.u32 8, %s14
        %p150 = scmp.lt.s32.totalorder %s149, 15
        %s151 = scalar_select %p150, %s149, 15
        %s152 = smul.addr %s151, 8
        %s153 = scalar_lea.vmem %s1, %s152
        %s154 = smul.u32 8, %s14
        %s155 = smul.u32 8, %s14
        %p156 = scmp.lt.s32.totalorder %s155, 15
        %s157 = scalar_select %p156, %s155, 15
        %s158 = smul.addr %s157, 8
        %s159 = scalar_lea.vmem %s2, %s158
        %s160 = smul.u32 8, %s14
        %v161 = vld [vmem:[%s153] sm:$0xff]
        %v162 = vld [vmem:[%s153 + $0x8] sm:$0xff]
        %v163 = vld [vmem:[%s153 + $0x10] sm:$0xff]
        %v164 = vld [vmem:[%s153 + $0x18] sm:$0xff]
        %v165 = vld [vmem:[%s153 + $0x20] sm:$0xff]
        %v166 = vld [vmem:[%s153 + $0x28] sm:$0xff]
        %v167 = vld [vmem:[%s153 + $0x30] sm:$0xff]
        %v168 = vld [vmem:[%s153 + $0x38] sm:$0xff]
        %170 = vset.pattern.permute.xlu0 0
        %171 = vperm.xlu0 %170, %v161
        %v172 = vpop.permute.xlu0 %171
        %175 = vset.pattern.permute.xlu0 0
        %176 = vperm.xlu0 %175, %v162
        %v177 = vpop.permute.xlu0 %176
        %180 = vset.pattern.permute.xlu0 0
        %181 = vperm.xlu0 %180, %v163
        %v182 = vpop.permute.xlu0 %181
        %185 = vset.pattern.permute.xlu0 0
        %186 = vperm.xlu0 %185, %v164
        %v187 = vpop.permute.xlu0 %186
        %190 = vset.pattern.permute.xlu0 0
        %191 = vperm.xlu0 %190, %v165
        %v192 = vpop.permute.xlu0 %191
        %195 = vset.pattern.permute.xlu0 0
        %196 = vperm.xlu0 %195, %v166
        %v197 = vpop.permute.xlu0 %196
        %200 = vset.pattern.permute.xlu0 0
        %201 = vperm.xlu0 %200, %v167
        %v202 = vpop.permute.xlu0 %201
        %205 = vset.pattern.permute.xlu0 0
        %206 = vperm.xlu0 %205, %v168
        %v207 = vpop.permute.xlu0 %206
        %vm209 = vcmp.gt.f32.partialorder %v172, %v161
        %vm210 = vcmp.gt.f32.partialorder %v177, %v162
        %vm211 = vcmp.gt.f32.partialorder %v182, %v163
        %vm212 = vcmp.gt.f32.partialorder %v187, %v164
        %vm213 = vcmp.gt.f32.partialorder %v192, %v165
        %vm214 = vcmp.gt.f32.partialorder %v197, %v166
        %vm215 = vcmp.gt.f32.partialorder %v202, %v167
        %vm216 = vcmp.gt.f32.partialorder %v207, %v168
        %v217 = vsel %vm209, 1, 0
        %v218 = vsel %vm210, 1, 0
        %v219 = vsel %vm211, 1, 0
        %v220 = vsel %vm212, 1, 0
        %v221 = vsel %vm213, 1, 0
        %v222 = vsel %vm214, 1, 0
        %v223 = vsel %vm215, 1, 0
        %v224 = vsel %vm216, 1, 0
        %v225 = vcvt.s32.f32 %v217
        %v226 = vcvt.s32.f32 %v218
        %v227 = vcvt.s32.f32 %v219
        %v228 = vcvt.s32.f32 %v220
        %v229 = vcvt.s32.f32 %v221
        %v230 = vcvt.s32.f32 %v222
        %v231 = vcvt.s32.f32 %v223
        %v232 = vcvt.s32.f32 %v224
        %v233 = vadd.f32 %v225, 0.0
        %v234 = vadd.f32 %v226, 0.0
        %v235 = vadd.f32 %v227, 0.0
        %v236 = vadd.f32 %v228, 0.0
        %v237 = vadd.f32 %v229, 0.0
        %v238 = vadd.f32 %v230, 0.0
        %v239 = vadd.f32 %v231, 0.0
        %v240 = vadd.f32 %v232, 0.0
        %241 = vset.pattern.permute.xlu0 1
        %242 = vperm.xlu0 %241, %v161
        %v243 = vpop.permute.xlu0 %242
        %245 = vset.pattern.permute.xlu0 1
        %246 = vperm.xlu0 %245, %v162
        %v247 = vpop.permute.xlu0 %246
        %249 = vset.pattern.permute.xlu0 1
        %250 = vperm.xlu0 %249, %v163
        %v251 = vpop.permute.xlu0 %250
        %253 = vset.pattern.permute.xlu0 1
        %254 = vperm.xlu0 %253, %v164
        %v255 = vpop.permute.xlu0 %254
        %257 = vset.pattern.permute.xlu0 1
        %258 = vperm.xlu0 %257, %v165
        %v259 = vpop.permute.xlu0 %258
        %261 = vset.pattern.permute.xlu0 1
        %262 = vperm.xlu0 %261, %v166
        %v263 = vpop.permute.xlu0 %262
        %265 = vset.pattern.permute.xlu0 1
        %266 = vperm.xlu0 %265, %v167
        %v267 = vpop.permute.xlu0 %266
        %269 = vset.pattern.permute.xlu0 1
        %270 = vperm.xlu0 %269, %v168
        %v271 = vpop.permute.xlu0 %270
        %vm273 = vcmp.gt.f32.partialorder %v243, %v161
        %vm274 = vcmp.gt.f32.partialorder %v247, %v162
        %vm275 = vcmp.gt.f32.partialorder %v251, %v163
        %vm276 = vcmp.gt.f32.partialorder %v255, %v164
        %vm277 = vcmp.gt.f32.partialorder %v259, %v165
        %vm278 = vcmp.gt.f32.partialorder %v263, %v166
        %vm279 = vcmp.gt.f32.partialorder %v267, %v167
        %vm280 = vcmp.gt.f32.partialorder %v271, %v168
        %v281 = vsel %vm273, 1, 0
        %v282 = vsel %vm274, 1, 0
        %v283 = vsel %vm275, 1, 0
        %v284 = vsel %vm276, 1, 0
        %v285 = vsel %vm277, 1, 0
        %v286 = vsel %vm278, 1, 0
        %v287 = vsel %vm279, 1, 0
        %v288 = vsel %vm280, 1, 0
        %v289 = vcvt.s32.f32 %v281
        %v290 = vcvt.s32.f32 %v282
        %v291 = vcvt.s32.f32 %v283
        %v292 = vcvt.s32.f32 %v284
        %v293 = vcvt.s32.f32 %v285
        %v294 = vcvt.s32.f32 %v286
        %v295 = vcvt.s32.f32 %v287
        %v296 = vcvt.s32.f32 %v288
        %v297 = vadd.f32 %v233, %v289
        %v298 = vadd.f32 %v234, %v290
        %v299 = vadd.f32 %v235, %v291
        %v300 = vadd.f32 %v236, %v292
        %v301 = vadd.f32 %v237, %v293
        %v302 = vadd.f32 %v238, %v294
        %v303 = vadd.f32 %v239, %v295
        %v304 = vadd.f32 %v240, %v296
        %305 = vset.pattern.permute.xlu0 2
        %306 = vperm.xlu0 %305, %v161
        %v307 = vpop.permute.xlu0 %306
        %309 = vset.pattern.permute.xlu0 2
        %310 = vperm.xlu0 %309, %v162
        %v311 = vpop.permute.xlu0 %310
        %313 = vset.pattern.permute.xlu0 2
        %314 = vperm.xlu0 %313, %v163
        %v315 = vpop.permute.xlu0 %314
        %317 = vset.pattern.permute.xlu0 2
        %318 = vperm.xlu0 %317, %v164
        %v319 = vpop.permute.xlu0 %318
        %321 = vset.pattern.permute.xlu0 2
        %322 = vperm.xlu0 %321, %v165
        %v323 = vpop.permute.xlu0 %322
        %325 = vset.pattern.permute.xlu0 2
        %326 = vperm.xlu0 %325, %v166
        %v327 = vpop.permute.xlu0 %326
        %329 = vset.pattern.permute.xlu0 2
        %330 = vperm.xlu0 %329, %v167
        %v331 = vpop.permute.xlu0 %330
        %333 = vset.pattern.permute.xlu0 2
        %334 = vperm.xlu0 %333, %v168
        %v335 = vpop.permute.xlu0 %334
        %vm337 = vcmp.gt.f32.partialorder %v307, %v161
        %vm338 = vcmp.gt.f32.partialorder %v311, %v162
        %vm339 = vcmp.gt.f32.partialorder %v315, %v163
        %vm340 = vcmp.gt.f32.partialorder %v319, %v164
        %vm341 = vcmp.gt.f32.partialorder %v323, %v165
        %vm342 = vcmp.gt.f32.partialorder %v327, %v166
        %vm343 = vcmp.gt.f32.partialorder %v331, %v167
        %vm344 = vcmp.gt.f32.partialorder %v335, %v168
        %v345 = vsel %vm337, 1, 0
        %v346 = vsel %vm338, 1, 0
        %v347 = vsel %vm339, 1, 0
        %v348 = vsel %vm340, 1, 0
        %v349 = vsel %vm341, 1, 0
        %v350 = vsel %vm342, 1, 0
        %v351 = vsel %vm343, 1, 0
        %v352 = vsel %vm344, 1, 0
        %v353 = vcvt.s32.f32 %v345
        %v354 = vcvt.s32.f32 %v346
        %v355 = vcvt.s32.f32 %v347
        %v356 = vcvt.s32.f32 %v348
        %v357 = vcvt.s32.f32 %v349
        %v358 = vcvt.s32.f32 %v350
        %v359 = vcvt.s32.f32 %v351
        %v360 = vcvt.s32.f32 %v352
        %v361 = vadd.f32 %v297, %v353
        %v362 = vadd.f32 %v298, %v354
        %v363 = vadd.f32 %v299, %v355
        %v364 = vadd.f32 %v300, %v356
        %v365 = vadd.f32 %v301, %v357
        %v366 = vadd.f32 %v302, %v358
        %v367 = vadd.f32 %v303, %v359
        %v368 = vadd.f32 %v304, %v360
        %369 = vset.pattern.permute.xlu0 3
        %370 = vperm.xlu0 %369, %v161
        %v371 = vpop.permute.xlu0 %370
        %373 = vset.pattern.permute.xlu0 3
        %374 = vperm.xlu0 %373, %v162
        %v375 = vpop.permute.xlu0 %374
        %377 = vset.pattern.permute.xlu0 3
        %378 = vperm.xlu0 %377, %v163
        %v379 = vpop.permute.xlu0 %378
        %381 = vset.pattern.permute.xlu0 3
        %382 = vperm.xlu0 %381, %v164
        %v383 = vpop.permute.xlu0 %382
        %385 = vset.pattern.permute.xlu0 3
        %386 = vperm.xlu0 %385, %v165
        %v387 = vpop.permute.xlu0 %386
        %389 = vset.pattern.permute.xlu0 3
        %390 = vperm.xlu0 %389, %v166
        %v391 = vpop.permute.xlu0 %390
        %393 = vset.pattern.permute.xlu0 3
        %394 = vperm.xlu0 %393, %v167
        %v395 = vpop.permute.xlu0 %394
        %397 = vset.pattern.permute.xlu0 3
        %398 = vperm.xlu0 %397, %v168
        %v399 = vpop.permute.xlu0 %398
        %vm401 = vcmp.gt.f32.partialorder %v371, %v161
        %vm402 = vcmp.gt.f32.partialorder %v375, %v162
        %vm403 = vcmp.gt.f32.partialorder %v379, %v163
        %vm404 = vcmp.gt.f32.partialorder %v383, %v164
        %vm405 = vcmp.gt.f32.partialorder %v387, %v165
        %vm406 = vcmp.gt.f32.partialorder %v391, %v166
        %vm407 = vcmp.gt.f32.partialorder %v395, %v167
        %vm408 = vcmp.gt.f32.partialorder %v399, %v168
        %v409 = vsel %vm401, 1, 0
        %v410 = vsel %vm402, 1, 0
        %v411 = vsel %vm403, 1, 0
        %v412 = vsel %vm404, 1, 0
        %v413 = vsel %vm405, 1, 0
        %v414 = vsel %vm406, 1, 0
        %v415 = vsel %vm407, 1, 0
        %v416 = vsel %vm408, 1, 0
        %v417 = vcvt.s32.f32 %v409
        %v418 = vcvt.s32.f32 %v410
        %v419 = vcvt.s32.f32 %v411
        %v420 = vcvt.s32.f32 %v412
        %v421 = vcvt.s32.f32 %v413
        %v422 = vcvt.s32.f32 %v414
        %v423 = vcvt.s32.f32 %v415
        %v424 = vcvt.s32.f32 %v416
        %v425 = vadd.f32 %v361, %v417
        %v426 = vadd.f32 %v362, %v418
        %v427 = vadd.f32 %v363, %v419
        %v428 = vadd.f32 %v364, %v420
        %v429 = vadd.f32 %v365, %v421
        %v430 = vadd.f32 %v366, %v422
        %v431 = vadd.f32 %v367, %v423
        %v432 = vadd.f32 %v368, %v424
        %433 = vset.pattern.permute.xlu0 4
        %434 = vperm.xlu0 %433, %v161
        %v435 = vpop.permute.xlu0 %434
        %437 = vset.pattern.permute.xlu0 4
        %438 = vperm.xlu0 %437, %v162
        %v439 = vpop.permute.xlu0 %438
        %441 = vset.pattern.permute.xlu0 4
        %442 = vperm.xlu0 %441, %v163
        %v443 = vpop.permute.xlu0 %442
        %445 = vset.pattern.permute.xlu0 4
        %446 = vperm.xlu0 %445, %v164
        %v447 = vpop.permute.xlu0 %446
        %449 = vset.pattern.permute.xlu0 4
        %450 = vperm.xlu0 %449, %v165
        %v451 = vpop.permute.xlu0 %450
        %453 = vset.pattern.permute.xlu0 4
        %454 = vperm.xlu0 %453, %v166
        %v455 = vpop.permute.xlu0 %454
        %457 = vset.pattern.permute.xlu0 4
        %458 = vperm.xlu0 %457, %v167
        %v459 = vpop.permute.xlu0 %458
        %461 = vset.pattern.permute.xlu0 4
        %462 = vperm.xlu0 %461, %v168
        %v463 = vpop.permute.xlu0 %462
        %vm465 = vcmp.gt.f32.partialorder %v435, %v161
        %vm466 = vcmp.gt.f32.partialorder %v439, %v162
        %vm467 = vcmp.gt.f32.partialorder %v443, %v163
        %vm468 = vcmp.gt.f32.partialorder %v447, %v164
        %vm469 = vcmp.gt.f32.partialorder %v451, %v165
        %vm470 = vcmp.gt.f32.partialorder %v455, %v166
        %vm471 = vcmp.gt.f32.partialorder %v459, %v167
        %vm472 = vcmp.gt.f32.partialorder %v463, %v168
        %v473 = vsel %vm465, 1, 0
        %v474 = vsel %vm466, 1, 0
        %v475 = vsel %vm467, 1, 0
        %v476 = vsel %vm468, 1, 0
        %v477 = vsel %vm469, 1, 0
        %v478 = vsel %vm470, 1, 0
        %v479 = vsel %vm471, 1, 0
        %v480 = vsel %vm472, 1, 0
        %v481 = vcvt.s32.f32 %v473
        %v482 = vcvt.s32.f32 %v474
        %v483 = vcvt.s32.f32 %v475
        %v484 = vcvt.s32.f32 %v476
        %v485 = vcvt.s32.f32 %v477
        %v486 = vcvt.s32.f32 %v478
        %v487 = vcvt.s32.f32 %v479
        %v488 = vcvt.s32.f32 %v480
        %v489 = vadd.f32 %v425, %v481
        %v490 = vadd.f32 %v426, %v482
        %v491 = vadd.f32 %v427, %v483
        %v492 = vadd.f32 %v428, %v484
        %v493 = vadd.f32 %v429, %v485
        %v494 = vadd.f32 %v430, %v486
        %v495 = vadd.f32 %v431, %v487
        %v496 = vadd.f32 %v432, %v488
        %497 = vset.pattern.permute.xlu0 5
        %498 = vperm.xlu0 %497, %v161
        %v499 = vpop.permute.xlu0 %498
        %501 = vset.pattern.permute.xlu0 5
        %502 = vperm.xlu0 %501, %v162
        %v503 = vpop.permute.xlu0 %502
        %505 = vset.pattern.permute.xlu0 5
        %506 = vperm.xlu0 %505, %v163
        %v507 = vpop.permute.xlu0 %506
        %509 = vset.pattern.permute.xlu0 5
        %510 = vperm.xlu0 %509, %v164
        %v511 = vpop.permute.xlu0 %510
        %513 = vset.pattern.permute.xlu0 5
        %514 = vperm.xlu0 %513, %v165
        %v515 = vpop.permute.xlu0 %514
        %517 = vset.pattern.permute.xlu0 5
        %518 = vperm.xlu0 %517, %v166
        %v519 = vpop.permute.xlu0 %518
        %521 = vset.pattern.permute.xlu0 5
        %522 = vperm.xlu0 %521, %v167
        %v523 = vpop.permute.xlu0 %522
        %525 = vset.pattern.permute.xlu0 5
        %526 = vperm.xlu0 %525, %v168
        %v527 = vpop.permute.xlu0 %526
        %vm529 = vcmp.gt.f32.partialorder %v499, %v161
        %vm530 = vcmp.gt.f32.partialorder %v503, %v162
        %vm531 = vcmp.gt.f32.partialorder %v507, %v163
        %vm532 = vcmp.gt.f32.partialorder %v511, %v164
        %vm533 = vcmp.gt.f32.partialorder %v515, %v165
        %vm534 = vcmp.gt.f32.partialorder %v519, %v166
        %vm535 = vcmp.gt.f32.partialorder %v523, %v167
        %vm536 = vcmp.gt.f32.partialorder %v527, %v168
        %v537 = vsel %vm529, 1, 0
        %v538 = vsel %vm530, 1, 0
        %v539 = vsel %vm531, 1, 0
        %v540 = vsel %vm532, 1, 0
        %v541 = vsel %vm533, 1, 0
        %v542 = vsel %vm534, 1, 0
        %v543 = vsel %vm535, 1, 0
        %v544 = vsel %vm536, 1, 0
        %v545 = vcvt.s32.f32 %v537
        %v546 = vcvt.s32.f32 %v538
        %v547 = vcvt.s32.f32 %v539
        %v548 = vcvt.s32.f32 %v540
        %v549 = vcvt.s32.f32 %v541
        %v550 = vcvt.s32.f32 %v542
        %v551 = vcvt.s32.f32 %v543
        %v552 = vcvt.s32.f32 %v544
        %v553 = vadd.f32 %v489, %v545
        %v554 = vadd.f32 %v490, %v546
        %v555 = vadd.f32 %v491, %v547
        %v556 = vadd.f32 %v492, %v548
        %v557 = vadd.f32 %v493, %v549
        %v558 = vadd.f32 %v494, %v550
        %v559 = vadd.f32 %v495, %v551
        %v560 = vadd.f32 %v496, %v552
        %561 = vset.pattern.permute.xlu0 6
        %562 = vperm.xlu0 %561, %v161
        %v563 = vpop.permute.xlu0 %562
        %565 = vset.pattern.permute.xlu0 6
        %566 = vperm.xlu0 %565, %v162
        %v567 = vpop.permute.xlu0 %566
        %569 = vset.pattern.permute.xlu0 6
        %570 = vperm.xlu0 %569, %v163
        %v571 = vpop.permute.xlu0 %570
        %573 = vset.pattern.permute.xlu0 6
        %574 = vperm.xlu0 %573, %v164
        %v575 = vpop.permute.xlu0 %574
        %577 = vset.pattern.permute.xlu0 6
        %578 = vperm.xlu0 %577, %v165
        %v579 = vpop.permute.xlu0 %578
        %581 = vset.pattern.permute.xlu0 6
        %582 = vperm.xlu0 %581, %v166
        %v583 = vpop.permute.xlu0 %582
        %585 = vset.pattern.permute.xlu0 6
        %586 = vperm.xlu0 %585, %v167
        %v587 = vpop.permute.xlu0 %586
        %589 = vset.pattern.permute.xlu0 6
        %590 = vperm.xlu0 %589, %v168
        %v591 = vpop.permute.xlu0 %590
        %vm593 = vcmp.gt.f32.partialorder %v563, %v161
        %vm594 = vcmp.gt.f32.partialorder %v567, %v162
        %vm595 = vcmp.gt.f32.partialorder %v571, %v163
        %vm596 = vcmp.gt.f32.partialorder %v575, %v164
        %vm597 = vcmp.gt.f32.partialorder %v579, %v165
        %vm598 = vcmp.gt.f32.partialorder %v583, %v166
        %vm599 = vcmp.gt.f32.partialorder %v587, %v167
        %vm600 = vcmp.gt.f32.partialorder %v591, %v168
        %v601 = vsel %vm593, 1, 0
        %v602 = vsel %vm594, 1, 0
        %v603 = vsel %vm595, 1, 0
        %v604 = vsel %vm596, 1, 0
        %v605 = vsel %vm597, 1, 0
        %v606 = vsel %vm598, 1, 0
        %v607 = vsel %vm599, 1, 0
        %v608 = vsel %vm600, 1, 0
        %v609 = vcvt.s32.f32 %v601
        %v610 = vcvt.s32.f32 %v602
        %v611 = vcvt.s32.f32 %v603
        %v612 = vcvt.s32.f32 %v604
        %v613 = vcvt.s32.f32 %v605
        %v614 = vcvt.s32.f32 %v606
        %v615 = vcvt.s32.f32 %v607
        %v616 = vcvt.s32.f32 %v608
        %v617 = vadd.f32 %v553, %v609
        %v618 = vadd.f32 %v554, %v610
        %v619 = vadd.f32 %v555, %v611
        %v620 = vadd.f32 %v556, %v612
        %v621 = vadd.f32 %v557, %v613
        %v622 = vadd.f32 %v558, %v614
        %v623 = vadd.f32 %v559, %v615
        %v624 = vadd.f32 %v560, %v616
        %625 = vset.pattern.permute.xlu0 7
        %626 = vperm.xlu0 %625, %v161
        %v627 = vpop.permute.xlu0 %626
        %629 = vset.pattern.permute.xlu0 7
        %630 = vperm.xlu0 %629, %v162
        %v631 = vpop.permute.xlu0 %630
        %633 = vset.pattern.permute.xlu0 7
        %634 = vperm.xlu0 %633, %v163
        %v635 = vpop.permute.xlu0 %634
        %637 = vset.pattern.permute.xlu0 7
        %638 = vperm.xlu0 %637, %v164
        %v639 = vpop.permute.xlu0 %638
        %641 = vset.pattern.permute.xlu0 7
        %642 = vperm.xlu0 %641, %v165
        %v643 = vpop.permute.xlu0 %642
        %645 = vset.pattern.permute.xlu0 7
        %646 = vperm.xlu0 %645, %v166
        %v647 = vpop.permute.xlu0 %646
        %649 = vset.pattern.permute.xlu0 7
        %650 = vperm.xlu0 %649, %v167
        %v651 = vpop.permute.xlu0 %650
        %653 = vset.pattern.permute.xlu0 7
        %654 = vperm.xlu0 %653, %v168
        %v655 = vpop.permute.xlu0 %654
        %vm657 = vcmp.gt.f32.partialorder %v627, %v161
        %vm658 = vcmp.gt.f32.partialorder %v631, %v162
        %vm659 = vcmp.gt.f32.partialorder %v635, %v163
        %vm660 = vcmp.gt.f32.partialorder %v639, %v164
        %vm661 = vcmp.gt.f32.partialorder %v643, %v165
        %vm662 = vcmp.gt.f32.partialorder %v647, %v166
        %vm663 = vcmp.gt.f32.partialorder %v651, %v167
        %vm664 = vcmp.gt.f32.partialorder %v655, %v168
        %v665 = vsel %vm657, 1, 0
        %v666 = vsel %vm658, 1, 0
        %v667 = vsel %vm659, 1, 0
        %v668 = vsel %vm660, 1, 0
        %v669 = vsel %vm661, 1, 0
        %v670 = vsel %vm662, 1, 0
        %v671 = vsel %vm663, 1, 0
        %v672 = vsel %vm664, 1, 0
        %v673 = vcvt.s32.f32 %v665
        %v674 = vcvt.s32.f32 %v666
        %v675 = vcvt.s32.f32 %v667
        %v676 = vcvt.s32.f32 %v668
        %v677 = vcvt.s32.f32 %v669
        %v678 = vcvt.s32.f32 %v670
        %v679 = vcvt.s32.f32 %v671
        %v680 = vcvt.s32.f32 %v672
        %v681 = vadd.f32 %v617, %v673
        %v682 = vadd.f32 %v618, %v674
        %v683 = vadd.f32 %v619, %v675
        %v684 = vadd.f32 %v620, %v676
        %v685 = vadd.f32 %v621, %v677
        %v686 = vadd.f32 %v622, %v678
        %v687 = vadd.f32 %v623, %v679
        %v688 = vadd.f32 %v624, %v680
        %689 = vset.pattern.permute.xlu0 8
        %690 = vperm.xlu0 %689, %v161
        %v691 = vpop.permute.xlu0 %690
        %693 = vset.pattern.permute.xlu0 8
        %694 = vperm.xlu0 %693, %v162
        %v695 = vpop.permute.xlu0 %694
        %697 = vset.pattern.permute.xlu0 8
        %698 = vperm.xlu0 %697, %v163
        %v699 = vpop.permute.xlu0 %698
        %701 = vset.pattern.permute.xlu0 8
        %702 = vperm.xlu0 %701, %v164
        %v703 = vpop.permute.xlu0 %702
        %705 = vset.pattern.permute.xlu0 8
        %706 = vperm.xlu0 %705, %v165
        %v707 = vpop.permute.xlu0 %706
        %709 = vset.pattern.permute.xlu0 8
        %710 = vperm.xlu0 %709, %v166
        %v711 = vpop.permute.xlu0 %710
        %713 = vset.pattern.permute.xlu0 8
        %714 = vperm.xlu0 %713, %v167
        %v715 = vpop.permute.xlu0 %714
        %717 = vset.pattern.permute.xlu0 8
        %718 = vperm.xlu0 %717, %v168
        %v719 = vpop.permute.xlu0 %718
        %vm721 = vcmp.gt.f32.partialorder %v691, %v161
        %vm722 = vcmp.gt.f32.partialorder %v695, %v162
        %vm723 = vcmp.gt.f32.partialorder %v699, %v163
        %vm724 = vcmp.gt.f32.partialorder %v703, %v164
        %vm725 = vcmp.gt.f32.partialorder %v707, %v165
        %vm726 = vcmp.gt.f32.partialorder %v711, %v166
        %vm727 = vcmp.gt.f32.partialorder %v715, %v167
        %vm728 = vcmp.gt.f32.partialorder %v719, %v168
        %v729 = vsel %vm721, 1, 0
        %v730 = vsel %vm722, 1, 0
        %v731 = vsel %vm723, 1, 0
        %v732 = vsel %vm724, 1, 0
        %v733 = vsel %vm725, 1, 0
        %v734 = vsel %vm726, 1, 0
        %v735 = vsel %vm727, 1, 0
        %v736 = vsel %vm728, 1, 0
        %v737 = vcvt.s32.f32 %v729
        %v738 = vcvt.s32.f32 %v730
        %v739 = vcvt.s32.f32 %v731
        %v740 = vcvt.s32.f32 %v732
        %v741 = vcvt.s32.f32 %v733
        %v742 = vcvt.s32.f32 %v734
        %v743 = vcvt.s32.f32 %v735
        %v744 = vcvt.s32.f32 %v736
        %v745 = vadd.f32 %v681, %v737
        %v746 = vadd.f32 %v682, %v738
        %v747 = vadd.f32 %v683, %v739
        %v748 = vadd.f32 %v684, %v740
        %v749 = vadd.f32 %v685, %v741
        %v750 = vadd.f32 %v686, %v742
        %v751 = vadd.f32 %v687, %v743
        %v752 = vadd.f32 %v688, %v744
        %753 = vset.pattern.permute.xlu0 9
        %754 = vperm.xlu0 %753, %v161
        %v755 = vpop.permute.xlu0 %754
        %757 = vset.pattern.permute.xlu0 9
        %758 = vperm.xlu0 %757, %v162
        %v759 = vpop.permute.xlu0 %758
        %761 = vset.pattern.permute.xlu0 9
        %762 = vperm.xlu0 %761, %v163
        %v763 = vpop.permute.xlu0 %762
        %765 = vset.pattern.permute.xlu0 9
        %766 = vperm.xlu0 %765, %v164
        %v767 = vpop.permute.xlu0 %766
        %769 = vset.pattern.permute.xlu0 9
        %770 = vperm.xlu0 %769, %v165
        %v771 = vpop.permute.xlu0 %770
        %773 = vset.pattern.permute.xlu0 9
        %774 = vperm.xlu0 %773, %v166
        %v775 = vpop.permute.xlu0 %774
        %777 = vset.pattern.permute.xlu0 9
        %778 = vperm.xlu0 %777, %v167
        %v779 = vpop.permute.xlu0 %778
        %781 = vset.pattern.permute.xlu0 9
        %782 = vperm.xlu0 %781, %v168
        %v783 = vpop.permute.xlu0 %782
        %vm785 = vcmp.gt.f32.partialorder %v755, %v161
        %vm786 = vcmp.gt.f32.partialorder %v759, %v162
        %vm787 = vcmp.gt.f32.partialorder %v763, %v163
        %vm788 = vcmp.gt.f32.partialorder %v767, %v164
        %vm789 = vcmp.gt.f32.partialorder %v771, %v165
        %vm790 = vcmp.gt.f32.partialorder %v775, %v166
        %vm791 = vcmp.gt.f32.partialorder %v779, %v167
        %vm792 = vcmp.gt.f32.partialorder %v783, %v168
        %v793 = vsel %vm785, 1, 0
        %v794 = vsel %vm786, 1, 0
        %v795 = vsel %vm787, 1, 0
        %v796 = vsel %vm788, 1, 0
        %v797 = vsel %vm789, 1, 0
        %v798 = vsel %vm790, 1, 0
        %v799 = vsel %vm791, 1, 0
        %v800 = vsel %vm792, 1, 0
        %v801 = vcvt.s32.f32 %v793
        %v802 = vcvt.s32.f32 %v794
        %v803 = vcvt.s32.f32 %v795
        %v804 = vcvt.s32.f32 %v796
        %v805 = vcvt.s32.f32 %v797
        %v806 = vcvt.s32.f32 %v798
        %v807 = vcvt.s32.f32 %v799
        %v808 = vcvt.s32.f32 %v800
        %v809 = vadd.f32 %v745, %v801
        %v810 = vadd.f32 %v746, %v802
        %v811 = vadd.f32 %v747, %v803
        %v812 = vadd.f32 %v748, %v804
        %v813 = vadd.f32 %v749, %v805
        %v814 = vadd.f32 %v750, %v806
        %v815 = vadd.f32 %v751, %v807
        %v816 = vadd.f32 %v752, %v808
        %817 = vset.pattern.permute.xlu0 10
        %818 = vperm.xlu0 %817, %v161
        %v819 = vpop.permute.xlu0 %818
        %821 = vset.pattern.permute.xlu0 10
        %822 = vperm.xlu0 %821, %v162
        %v823 = vpop.permute.xlu0 %822
        %825 = vset.pattern.permute.xlu0 10
        %826 = vperm.xlu0 %825, %v163
        %v827 = vpop.permute.xlu0 %826
        %829 = vset.pattern.permute.xlu0 10
        %830 = vperm.xlu0 %829, %v164
        %v831 = vpop.permute.xlu0 %830
        %833 = vset.pattern.permute.xlu0 10
        %834 = vperm.xlu0 %833, %v165
        %v835 = vpop.permute.xlu0 %834
        %837 = vset.pattern.permute.xlu0 10
        %838 = vperm.xlu0 %837, %v166
        %v839 = vpop.permute.xlu0 %838
        %841 = vset.pattern.permute.xlu0 10
        %842 = vperm.xlu0 %841, %v167
        %v843 = vpop.permute.xlu0 %842
        %845 = vset.pattern.permute.xlu0 10
        %846 = vperm.xlu0 %845, %v168
        %v847 = vpop.permute.xlu0 %846
        %vm849 = vcmp.gt.f32.partialorder %v819, %v161
        %vm850 = vcmp.gt.f32.partialorder %v823, %v162
        %vm851 = vcmp.gt.f32.partialorder %v827, %v163
        %vm852 = vcmp.gt.f32.partialorder %v831, %v164
        %vm853 = vcmp.gt.f32.partialorder %v835, %v165
        %vm854 = vcmp.gt.f32.partialorder %v839, %v166
        %vm855 = vcmp.gt.f32.partialorder %v843, %v167
        %vm856 = vcmp.gt.f32.partialorder %v847, %v168
        %v857 = vsel %vm849, 1, 0
        %v858 = vsel %vm850, 1, 0
        %v859 = vsel %vm851, 1, 0
        %v860 = vsel %vm852, 1, 0
        %v861 = vsel %vm853, 1, 0
        %v862 = vsel %vm854, 1, 0
        %v863 = vsel %vm855, 1, 0
        %v864 = vsel %vm856, 1, 0
        %v865 = vcvt.s32.f32 %v857
        %v866 = vcvt.s32.f32 %v858
        %v867 = vcvt.s32.f32 %v859
        %v868 = vcvt.s32.f32 %v860
        %v869 = vcvt.s32.f32 %v861
        %v870 = vcvt.s32.f32 %v862
        %v871 = vcvt.s32.f32 %v863
        %v872 = vcvt.s32.f32 %v864
        %v873 = vadd.f32 %v809, %v865
        %v874 = vadd.f32 %v810, %v866
        %v875 = vadd.f32 %v811, %v867
        %v876 = vadd.f32 %v812, %v868
        %v877 = vadd.f32 %v813, %v869
        %v878 = vadd.f32 %v814, %v870
        %v879 = vadd.f32 %v815, %v871
        %v880 = vadd.f32 %v816, %v872
        %881 = vset.pattern.permute.xlu0 11
        %882 = vperm.xlu0 %881, %v161
        %v883 = vpop.permute.xlu0 %882
        %885 = vset.pattern.permute.xlu0 11
        %886 = vperm.xlu0 %885, %v162
        %v887 = vpop.permute.xlu0 %886
        %889 = vset.pattern.permute.xlu0 11
        %890 = vperm.xlu0 %889, %v163
        %v891 = vpop.permute.xlu0 %890
        %893 = vset.pattern.permute.xlu0 11
        %894 = vperm.xlu0 %893, %v164
        %v895 = vpop.permute.xlu0 %894
        %897 = vset.pattern.permute.xlu0 11
        %898 = vperm.xlu0 %897, %v165
        %v899 = vpop.permute.xlu0 %898
        %901 = vset.pattern.permute.xlu0 11
        %902 = vperm.xlu0 %901, %v166
        %v903 = vpop.permute.xlu0 %902
        %905 = vset.pattern.permute.xlu0 11
        %906 = vperm.xlu0 %905, %v167
        %v907 = vpop.permute.xlu0 %906
        %909 = vset.pattern.permute.xlu0 11
        %910 = vperm.xlu0 %909, %v168
        %v911 = vpop.permute.xlu0 %910
        %vm913 = vcmp.gt.f32.partialorder %v883, %v161
        %vm914 = vcmp.gt.f32.partialorder %v887, %v162
        %vm915 = vcmp.gt.f32.partialorder %v891, %v163
        %vm916 = vcmp.gt.f32.partialorder %v895, %v164
        %vm917 = vcmp.gt.f32.partialorder %v899, %v165
        %vm918 = vcmp.gt.f32.partialorder %v903, %v166
        %vm919 = vcmp.gt.f32.partialorder %v907, %v167
        %vm920 = vcmp.gt.f32.partialorder %v911, %v168
        %v921 = vsel %vm913, 1, 0
        %v922 = vsel %vm914, 1, 0
        %v923 = vsel %vm915, 1, 0
        %v924 = vsel %vm916, 1, 0
        %v925 = vsel %vm917, 1, 0
        %v926 = vsel %vm918, 1, 0
        %v927 = vsel %vm919, 1, 0
        %v928 = vsel %vm920, 1, 0
        %v929 = vcvt.s32.f32 %v921
        %v930 = vcvt.s32.f32 %v922
        %v931 = vcvt.s32.f32 %v923
        %v932 = vcvt.s32.f32 %v924
        %v933 = vcvt.s32.f32 %v925
        %v934 = vcvt.s32.f32 %v926
        %v935 = vcvt.s32.f32 %v927
        %v936 = vcvt.s32.f32 %v928
        %v937 = vadd.f32 %v873, %v929
        %v938 = vadd.f32 %v874, %v930
        %v939 = vadd.f32 %v875, %v931
        %v940 = vadd.f32 %v876, %v932
        %v941 = vadd.f32 %v877, %v933
        %v942 = vadd.f32 %v878, %v934
        %v943 = vadd.f32 %v879, %v935
        %v944 = vadd.f32 %v880, %v936
        %945 = vset.pattern.permute.xlu0 12
        %946 = vperm.xlu0 %945, %v161
        %v947 = vpop.permute.xlu0 %946
        %949 = vset.pattern.permute.xlu0 12
        %950 = vperm.xlu0 %949, %v162
        %v951 = vpop.permute.xlu0 %950
        %953 = vset.pattern.permute.xlu0 12
        %954 = vperm.xlu0 %953, %v163
        %v955 = vpop.permute.xlu0 %954
        %957 = vset.pattern.permute.xlu0 12
        %958 = vperm.xlu0 %957, %v164
        %v959 = vpop.permute.xlu0 %958
        %961 = vset.pattern.permute.xlu0 12
        %962 = vperm.xlu0 %961, %v165
        %v963 = vpop.permute.xlu0 %962
        %965 = vset.pattern.permute.xlu0 12
        %966 = vperm.xlu0 %965, %v166
        %v967 = vpop.permute.xlu0 %966
        %969 = vset.pattern.permute.xlu0 12
        %970 = vperm.xlu0 %969, %v167
        %v971 = vpop.permute.xlu0 %970
        %973 = vset.pattern.permute.xlu0 12
        %974 = vperm.xlu0 %973, %v168
        %v975 = vpop.permute.xlu0 %974
        %vm977 = vcmp.gt.f32.partialorder %v947, %v161
        %vm978 = vcmp.gt.f32.partialorder %v951, %v162
        %vm979 = vcmp.gt.f32.partialorder %v955, %v163
        %vm980 = vcmp.gt.f32.partialorder %v959, %v164
        %vm981 = vcmp.gt.f32.partialorder %v963, %v165
        %vm982 = vcmp.gt.f32.partialorder %v967, %v166
        %vm983 = vcmp.gt.f32.partialorder %v971, %v167
        %vm984 = vcmp.gt.f32.partialorder %v975, %v168
        %v985 = vsel %vm977, 1, 0
        %v986 = vsel %vm978, 1, 0
        %v987 = vsel %vm979, 1, 0
        %v988 = vsel %vm980, 1, 0
        %v989 = vsel %vm981, 1, 0
        %v990 = vsel %vm982, 1, 0
        %v991 = vsel %vm983, 1, 0
        %v992 = vsel %vm984, 1, 0
        %v993 = vcvt.s32.f32 %v985
        %v994 = vcvt.s32.f32 %v986
        %v995 = vcvt.s32.f32 %v987
        %v996 = vcvt.s32.f32 %v988
        %v997 = vcvt.s32.f32 %v989
        %v998 = vcvt.s32.f32 %v990
        %v999 = vcvt.s32.f32 %v991
        %v1000 = vcvt.s32.f32 %v992
        %v1001 = vadd.f32 %v937, %v993
        %v1002 = vadd.f32 %v938, %v994
        %v1003 = vadd.f32 %v939, %v995
        %v1004 = vadd.f32 %v940, %v996
        %v1005 = vadd.f32 %v941, %v997
        %v1006 = vadd.f32 %v942, %v998
        %v1007 = vadd.f32 %v943, %v999
        %v1008 = vadd.f32 %v944, %v1000
        %1009 = vset.pattern.permute.xlu0 13
        %1010 = vperm.xlu0 %1009, %v161
        %v1011 = vpop.permute.xlu0 %1010
        %1013 = vset.pattern.permute.xlu0 13
        %1014 = vperm.xlu0 %1013, %v162
        %v1015 = vpop.permute.xlu0 %1014
        %1017 = vset.pattern.permute.xlu0 13
        %1018 = vperm.xlu0 %1017, %v163
        %v1019 = vpop.permute.xlu0 %1018
        %1021 = vset.pattern.permute.xlu0 13
        %1022 = vperm.xlu0 %1021, %v164
        %v1023 = vpop.permute.xlu0 %1022
        %1025 = vset.pattern.permute.xlu0 13
        %1026 = vperm.xlu0 %1025, %v165
        %v1027 = vpop.permute.xlu0 %1026
        %1029 = vset.pattern.permute.xlu0 13
        %1030 = vperm.xlu0 %1029, %v166
        %v1031 = vpop.permute.xlu0 %1030
        %1033 = vset.pattern.permute.xlu0 13
        %1034 = vperm.xlu0 %1033, %v167
        %v1035 = vpop.permute.xlu0 %1034
        %1037 = vset.pattern.permute.xlu0 13
        %1038 = vperm.xlu0 %1037, %v168
        %v1039 = vpop.permute.xlu0 %1038
        %vm1041 = vcmp.gt.f32.partialorder %v1011, %v161
        %vm1042 = vcmp.gt.f32.partialorder %v1015, %v162
        %vm1043 = vcmp.gt.f32.partialorder %v1019, %v163
        %vm1044 = vcmp.gt.f32.partialorder %v1023, %v164
        %vm1045 = vcmp.gt.f32.partialorder %v1027, %v165
        %vm1046 = vcmp.gt.f32.partialorder %v1031, %v166
        %vm1047 = vcmp.gt.f32.partialorder %v1035, %v167
        %vm1048 = vcmp.gt.f32.partialorder %v1039, %v168
        %v1049 = vsel %vm1041, 1, 0
        %v1050 = vsel %vm1042, 1, 0
        %v1051 = vsel %vm1043, 1, 0
        %v1052 = vsel %vm1044, 1, 0
        %v1053 = vsel %vm1045, 1, 0
        %v1054 = vsel %vm1046, 1, 0
        %v1055 = vsel %vm1047, 1, 0
        %v1056 = vsel %vm1048, 1, 0
        %v1057 = vcvt.s32.f32 %v1049
        %v1058 = vcvt.s32.f32 %v1050
        %v1059 = vcvt.s32.f32 %v1051
        %v1060 = vcvt.s32.f32 %v1052
        %v1061 = vcvt.s32.f32 %v1053
        %v1062 = vcvt.s32.f32 %v1054
        %v1063 = vcvt.s32.f32 %v1055
        %v1064 = vcvt.s32.f32 %v1056
        %v1065 = vadd.f32 %v1001, %v1057
        %v1066 = vadd.f32 %v1002, %v1058
        %v1067 = vadd.f32 %v1003, %v1059
        %v1068 = vadd.f32 %v1004, %v1060
        %v1069 = vadd.f32 %v1005, %v1061
        %v1070 = vadd.f32 %v1006, %v1062
        %v1071 = vadd.f32 %v1007, %v1063
        %v1072 = vadd.f32 %v1008, %v1064
        %1073 = vset.pattern.permute.xlu0 14
        %1074 = vperm.xlu0 %1073, %v161
        %v1075 = vpop.permute.xlu0 %1074
        %1077 = vset.pattern.permute.xlu0 14
        %1078 = vperm.xlu0 %1077, %v162
        %v1079 = vpop.permute.xlu0 %1078
        %1081 = vset.pattern.permute.xlu0 14
        %1082 = vperm.xlu0 %1081, %v163
        %v1083 = vpop.permute.xlu0 %1082
        %1085 = vset.pattern.permute.xlu0 14
        %1086 = vperm.xlu0 %1085, %v164
        %v1087 = vpop.permute.xlu0 %1086
        %1089 = vset.pattern.permute.xlu0 14
        %1090 = vperm.xlu0 %1089, %v165
        %v1091 = vpop.permute.xlu0 %1090
        %1093 = vset.pattern.permute.xlu0 14
        %1094 = vperm.xlu0 %1093, %v166
        %v1095 = vpop.permute.xlu0 %1094
        %1097 = vset.pattern.permute.xlu0 14
        %1098 = vperm.xlu0 %1097, %v167
        %v1099 = vpop.permute.xlu0 %1098
        %1101 = vset.pattern.permute.xlu0 14
        %1102 = vperm.xlu0 %1101, %v168
        %v1103 = vpop.permute.xlu0 %1102
        %vm1105 = vcmp.gt.f32.partialorder %v1075, %v161
        %vm1106 = vcmp.gt.f32.partialorder %v1079, %v162
        %vm1107 = vcmp.gt.f32.partialorder %v1083, %v163
        %vm1108 = vcmp.gt.f32.partialorder %v1087, %v164
        %vm1109 = vcmp.gt.f32.partialorder %v1091, %v165
        %vm1110 = vcmp.gt.f32.partialorder %v1095, %v166
        %vm1111 = vcmp.gt.f32.partialorder %v1099, %v167
        %vm1112 = vcmp.gt.f32.partialorder %v1103, %v168
        %v1113 = vsel %vm1105, 1, 0
        %v1114 = vsel %vm1106, 1, 0
        %v1115 = vsel %vm1107, 1, 0
        %v1116 = vsel %vm1108, 1, 0
        %v1117 = vsel %vm1109, 1, 0
        %v1118 = vsel %vm1110, 1, 0
        %v1119 = vsel %vm1111, 1, 0
        %v1120 = vsel %vm1112, 1, 0
        %v1121 = vcvt.s32.f32 %v1113
        %v1122 = vcvt.s32.f32 %v1114
        %v1123 = vcvt.s32.f32 %v1115
        %v1124 = vcvt.s32.f32 %v1116
        %v1125 = vcvt.s32.f32 %v1117
        %v1126 = vcvt.s32.f32 %v1118
        %v1127 = vcvt.s32.f32 %v1119
        %v1128 = vcvt.s32.f32 %v1120
        %v1129 = vadd.f32 %v1065, %v1121
        %v1130 = vadd.f32 %v1066, %v1122
        %v1131 = vadd.f32 %v1067, %v1123
        %v1132 = vadd.f32 %v1068, %v1124
        %v1133 = vadd.f32 %v1069, %v1125
        %v1134 = vadd.f32 %v1070, %v1126
        %v1135 = vadd.f32 %v1071, %v1127
        %v1136 = vadd.f32 %v1072, %v1128
        %1137 = vset.pattern.permute.xlu0 15
        %1138 = vperm.xlu0 %1137, %v161
        %v1139 = vpop.permute.xlu0 %1138
        %1141 = vset.pattern.permute.xlu0 15
        %1142 = vperm.xlu0 %1141, %v162
        %v1143 = vpop.permute.xlu0 %1142
        %1145 = vset.pattern.permute.xlu0 15
        %1146 = vperm.xlu0 %1145, %v163
        %v1147 = vpop.permute.xlu0 %1146
        %1149 = vset.pattern.permute.xlu0 15
        %1150 = vperm.xlu0 %1149, %v164
        %v1151 = vpop.permute.xlu0 %1150
        %1153 = vset.pattern.permute.xlu0 15
        %1154 = vperm.xlu0 %1153, %v165
        %v1155 = vpop.permute.xlu0 %1154
        %1157 = vset.pattern.permute.xlu0 15
        %1158 = vperm.xlu0 %1157, %v166
        %v1159 = vpop.permute.xlu0 %1158
        %1161 = vset.pattern.permute.xlu0 15
        %1162 = vperm.xlu0 %1161, %v167
        %v1163 = vpop.permute.xlu0 %1162
        %1165 = vset.pattern.permute.xlu0 15
        %1166 = vperm.xlu0 %1165, %v168
        %v1167 = vpop.permute.xlu0 %1166
        %vm1169 = vcmp.gt.f32.partialorder %v1139, %v161
        %vm1170 = vcmp.gt.f32.partialorder %v1143, %v162
        %vm1171 = vcmp.gt.f32.partialorder %v1147, %v163
        %vm1172 = vcmp.gt.f32.partialorder %v1151, %v164
        %vm1173 = vcmp.gt.f32.partialorder %v1155, %v165
        %vm1174 = vcmp.gt.f32.partialorder %v1159, %v166
        %vm1175 = vcmp.gt.f32.partialorder %v1163, %v167
        %vm1176 = vcmp.gt.f32.partialorder %v1167, %v168
        %v1177 = vsel %vm1169, 1, 0
        %v1178 = vsel %vm1170, 1, 0
        %v1179 = vsel %vm1171, 1, 0
        %v1180 = vsel %vm1172, 1, 0
        %v1181 = vsel %vm1173, 1, 0
        %v1182 = vsel %vm1174, 1, 0
        %v1183 = vsel %vm1175, 1, 0
        %v1184 = vsel %vm1176, 1, 0
        %v1185 = vcvt.s32.f32 %v1177
        %v1186 = vcvt.s32.f32 %v1178
        %v1187 = vcvt.s32.f32 %v1179
        %v1188 = vcvt.s32.f32 %v1180
        %v1189 = vcvt.s32.f32 %v1181
        %v1190 = vcvt.s32.f32 %v1182
        %v1191 = vcvt.s32.f32 %v1183
        %v1192 = vcvt.s32.f32 %v1184
        %v1193 = vadd.f32 %v1129, %v1185
        %v1194 = vadd.f32 %v1130, %v1186
        %v1195 = vadd.f32 %v1131, %v1187
        %v1196 = vadd.f32 %v1132, %v1188
        %v1197 = vadd.f32 %v1133, %v1189
        %v1198 = vadd.f32 %v1134, %v1190
        %v1199 = vadd.f32 %v1135, %v1191
        %v1200 = vadd.f32 %v1136, %v1192
        %vm1201 = vcmask 130048
        %v1202 = vsel %vm1201, %v161, -inf
        %1203 = vmax.xlane.f32.xlu0 %v1202
        %v1204 = vpop.xlane.xlu0 %1203
        %v1205 = vsel %vm1201, %v162, -inf
        %1206 = vmax.xlane.f32.xlu0 %v1205
        %v1207 = vpop.xlane.xlu0 %1206
        %v1208 = vsel %vm1201, %v163, -inf
        %1209 = vmax.xlane.f32.xlu0 %v1208
        %v1210 = vpop.xlane.xlu0 %1209
        %v1211 = vsel %vm1201, %v164, -inf
        %1212 = vmax.xlane.f32.xlu0 %v1211
        %v1213 = vpop.xlane.xlu0 %1212
        %v1214 = vsel %vm1201, %v165, -inf
        %1215 = vmax.xlane.f32.xlu0 %v1214
        %v1216 = vpop.xlane.xlu0 %1215
        %v1217 = vsel %vm1201, %v166, -inf
        %1218 = vmax.xlane.f32.xlu0 %v1217
        %v1219 = vpop.xlane.xlu0 %1218
        %v1220 = vsel %vm1201, %v167, -inf
        %1221 = vmax.xlane.f32.xlu0 %v1220
        %v1222 = vpop.xlane.xlu0 %1221
        %v1223 = vsel %vm1201, %v168, -inf
        %1224 = vmax.xlane.f32.xlu0 %v1223
        %v1225 = vpop.xlane.xlu0 %1224
        %v1226 = vsub.f32 %v161, %v1204
        %v1227 = vsub.f32 %v162, %v1207
        %v1228 = vsub.f32 %v163, %v1210
        %v1229 = vsub.f32 %v164, %v1213
        %v1230 = vsub.f32 %v165, %v1216
        %v1231 = vsub.f32 %v166, %v1219
        %v1232 = vsub.f32 %v167, %v1222
        %v1233 = vsub.f32 %v168, %v1225
        %v1234 = vmul.f32 %v1226, 1.442695
        %v1235 = vpow.pop %v1234
        %v1236 = vmul.f32 %v1227, 1.442695
        %v1237 = vpow.pop %v1236
        %v1238 = vmul.f32 %v1228, 1.442695
        %v1239 = vpow.pop %v1238
        %v1240 = vmul.f32 %v1229, 1.442695
        %v1241 = vpow.pop %v1240
        %v1242 = vmul.f32 %v1230, 1.442695
        %v1243 = vpow.pop %v1242
        %v1244 = vmul.f32 %v1231, 1.442695
        %v1245 = vpow.pop %v1244
        %v1246 = vmul.f32 %v1232, 1.442695
        %v1247 = vpow.pop %v1246
        %v1248 = vmul.f32 %v1233, 1.442695
        %v1249 = vpow.pop %v1248
        %vm1250 = vcmp.lt.f32.partialorder %v1193, 12.0
        %vm1251 = vcmp.lt.f32.partialorder %v1194, 12.0
        %vm1252 = vcmp.lt.f32.partialorder %v1195, 12.0
        %vm1253 = vcmp.lt.f32.partialorder %v1196, 12.0
        %vm1254 = vcmp.lt.f32.partialorder %v1197, 12.0
        %vm1255 = vcmp.lt.f32.partialorder %v1198, 12.0
        %vm1256 = vcmp.lt.f32.partialorder %v1199, 12.0
        %vm1257 = vcmp.lt.f32.partialorder %v1200, 12.0
        %v1258 = vsel %vm1250, %v1235, 0.0
        %v1259 = vsel %vm1251, %v1237, 0.0
        %v1260 = vsel %vm1252, %v1239, 0.0
        %v1261 = vsel %vm1253, %v1241, 0.0
        %v1262 = vsel %vm1254, %v1243, 0.0
        %v1263 = vsel %vm1255, %v1245, 0.0
        %v1264 = vsel %vm1256, %v1247, 0.0
        %v1265 = vsel %vm1257, %v1249, 0.0
        %v1266 = vsel %vm1201, %v1258, 0.0
        %1267 = vadd.xlane.f32.xlu0 %v1266
        %v1268 = vpop.xlane.xlu0 %1267
        %v1269 = vsel %vm1201, %v1259, 0.0
        %1270 = vadd.xlane.f32.xlu0 %v1269
        %v1271 = vpop.xlane.xlu0 %1270
        %v1272 = vsel %vm1201, %v1260, 0.0
        %1273 = vadd.xlane.f32.xlu0 %v1272
        %v1274 = vpop.xlane.xlu0 %1273
        %v1275 = vsel %vm1201, %v1261, 0.0
        %1276 = vadd.xlane.f32.xlu0 %v1275
        %v1277 = vpop.xlane.xlu0 %1276
        %v1278 = vsel %vm1201, %v1262, 0.0
        %1279 = vadd.xlane.f32.xlu0 %v1278
        %v1280 = vpop.xlane.xlu0 %1279
        %v1281 = vsel %vm1201, %v1263, 0.0
        %1282 = vadd.xlane.f32.xlu0 %v1281
        %v1283 = vpop.xlane.xlu0 %1282
        %v1284 = vsel %vm1201, %v1264, 0.0
        %1285 = vadd.xlane.f32.xlu0 %v1284
        %v1286 = vpop.xlane.xlu0 %1285
        %v1287 = vsel %vm1201, %v1265, 0.0
        %1288 = vadd.xlane.f32.xlu0 %v1287
        %v1289 = vpop.xlane.xlu0 %1288
        %s1290 = sld [smem:[#allocation2 + $0x2]]
        %v1291 = vrcp.pop %v1268
        %v1292 = vrcp.pop %v1271
        %v1293 = vrcp.pop %v1274
        %v1294 = vrcp.pop %v1277
        %v1295 = vrcp.pop %v1280
        %v1296 = vrcp.pop %v1283
        %v1297 = vrcp.pop %v1286
        %v1298 = vrcp.pop %v1289
        %v1299 = vstv %s1290
        %v1300 = vmul.f32 %v1299, %v1291
        %v1301 = vmul.f32 %v1299, %v1292
        %v1302 = vmul.f32 %v1299, %v1293
        %v1303 = vmul.f32 %v1299, %v1294
        %v1304 = vmul.f32 %v1299, %v1295
        %v1305 = vmul.f32 %v1299, %v1296
        %v1306 = vmul.f32 %v1299, %v1297
        %v1307 = vmul.f32 %v1299, %v1298
        %v1308 = vadd.f32 %v1300, 0.0
        %v1309 = vadd.f32 %v1301, 0.0
        %v1310 = vadd.f32 %v1302, 0.0
        %v1311 = vadd.f32 %v1303, 0.0
        %v1312 = vadd.f32 %v1304, 0.0
        %v1313 = vadd.f32 %v1305, 0.0
        %v1314 = vadd.f32 %v1306, 0.0
        %v1315 = vadd.f32 %v1307, 0.0
        %v1316 = vsel %vm1250, %v1308, 0.0
        %v1317 = vsel %vm1251, %v1309, 0.0
        %v1318 = vsel %vm1252, %v1310, 0.0
        %v1319 = vsel %vm1253, %v1311, 0.0
        %v1320 = vsel %vm1254, %v1312, 0.0
        %v1321 = vsel %vm1255, %v1313, 0.0
        %v1322 = vsel %vm1256, %v1314, 0.0
        %v1323 = vsel %vm1257, %v1315, 0.0
        %vm1324 = vcmp.lt.f32.partialorder %v1193, 10.0
        %vm1325 = vcmp.lt.f32.partialorder %v1194, 10.0
        %vm1326 = vcmp.lt.f32.partialorder %v1195, 10.0
        %vm1327 = vcmp.lt.f32.partialorder %v1196, 10.0
        %vm1328 = vcmp.lt.f32.partialorder %v1197, 10.0
        %vm1329 = vcmp.lt.f32.partialorder %v1198, 10.0
        %vm1330 = vcmp.lt.f32.partialorder %v1199, 10.0
        %vm1331 = vcmp.lt.f32.partialorder %v1200, 10.0
        %v1332 = vsel %vm1324, %v1235, 0.0
        %v1333 = vsel %vm1325, %v1237, 0.0
        %v1334 = vsel %vm1326, %v1239, 0.0
        %v1335 = vsel %vm1327, %v1241, 0.0
        %v1336 = vsel %vm1328, %v1243, 0.0
        %v1337 = vsel %vm1329, %v1245, 0.0
        %v1338 = vsel %vm1330, %v1247, 0.0
        %v1339 = vsel %vm1331, %v1249, 0.0
        %v1340 = vsel %vm1201, %v1332, 0.0
        %1341 = vadd.xlane.f32.xlu0 %v1340
        %v1342 = vpop.xlane.xlu0 %1341
        %v1343 = vsel %vm1201, %v1333, 0.0
        %1344 = vadd.xlane.f32.xlu0 %v1343
        %v1345 = vpop.xlane.xlu0 %1344
        %v1346 = vsel %vm1201, %v1334, 0.0
        %1347 = vadd.xlane.f32.xlu0 %v1346
        %v1348 = vpop.xlane.xlu0 %1347
        %v1349 = vsel %vm1201, %v1335, 0.0
        %1350 = vadd.xlane.f32.xlu0 %v1349
        %v1351 = vpop.xlane.xlu0 %1350
        %v1352 = vsel %vm1201, %v1336, 0.0
        %1353 = vadd.xlane.f32.xlu0 %v1352
        %v1354 = vpop.xlane.xlu0 %1353
        %v1355 = vsel %vm1201, %v1337, 0.0
        %1356 = vadd.xlane.f32.xlu0 %v1355
        %v1357 = vpop.xlane.xlu0 %1356
        %v1358 = vsel %vm1201, %v1338, 0.0
        %1359 = vadd.xlane.f32.xlu0 %v1358
        %v1360 = vpop.xlane.xlu0 %1359
        %v1361 = vsel %vm1201, %v1339, 0.0
        %1362 = vadd.xlane.f32.xlu0 %v1361
        %v1363 = vpop.xlane.xlu0 %1362
        %s1364 = sld [smem:[#allocation2 + $0x1]]
        %v1365 = vrcp.pop %v1342
        %v1366 = vrcp.pop %v1345
        %v1367 = vrcp.pop %v1348
        %v1368 = vrcp.pop %v1351
        %v1369 = vrcp.pop %v1354
        %v1370 = vrcp.pop %v1357
        %v1371 = vrcp.pop %v1360
        %v1372 = vrcp.pop %v1363
        %v1373 = vstv %s1364
        %v1374 = vmul.f32 %v1373, %v1365
        %v1375 = vmul.f32 %v1373, %v1366
        %v1376 = vmul.f32 %v1373, %v1367
        %v1377 = vmul.f32 %v1373, %v1368
        %v1378 = vmul.f32 %v1373, %v1369
        %v1379 = vmul.f32 %v1373, %v1370
        %v1380 = vmul.f32 %v1373, %v1371
        %v1381 = vmul.f32 %v1373, %v1372
        %v1382 = vadd.f32 %v1308, %v1374
        %v1383 = vadd.f32 %v1309, %v1375
        %v1384 = vadd.f32 %v1310, %v1376
        %v1385 = vadd.f32 %v1311, %v1377
        %v1386 = vadd.f32 %v1312, %v1378
        %v1387 = vadd.f32 %v1313, %v1379
        %v1388 = vadd.f32 %v1314, %v1380
        %v1389 = vadd.f32 %v1315, %v1381
        %v1390 = vsel %vm1324, %v1382, %v1316
        %v1391 = vsel %vm1325, %v1383, %v1317
        %v1392 = vsel %vm1326, %v1384, %v1318
        %v1393 = vsel %vm1327, %v1385, %v1319
        %v1394 = vsel %vm1328, %v1386, %v1320
        %v1395 = vsel %vm1329, %v1387, %v1321
        %v1396 = vsel %vm1330, %v1388, %v1322
        %v1397 = vsel %vm1331, %v1389, %v1323
        %vm1398 = vcmp.lt.f32.partialorder %v1193, 8.0
        %vm1399 = vcmp.lt.f32.partialorder %v1194, 8.0
        %vm1400 = vcmp.lt.f32.partialorder %v1195, 8.0
        %vm1401 = vcmp.lt.f32.partialorder %v1196, 8.0
        %vm1402 = vcmp.lt.f32.partialorder %v1197, 8.0
        %vm1403 = vcmp.lt.f32.partialorder %v1198, 8.0
        %vm1404 = vcmp.lt.f32.partialorder %v1199, 8.0
        %vm1405 = vcmp.lt.f32.partialorder %v1200, 8.0
        %v1406 = vsel %vm1398, %v1235, 0.0
        %v1407 = vsel %vm1399, %v1237, 0.0
        %v1408 = vsel %vm1400, %v1239, 0.0
        %v1409 = vsel %vm1401, %v1241, 0.0
        %v1410 = vsel %vm1402, %v1243, 0.0
        %v1411 = vsel %vm1403, %v1245, 0.0
        %v1412 = vsel %vm1404, %v1247, 0.0
        %v1413 = vsel %vm1405, %v1249, 0.0
        %v1414 = vsel %vm1201, %v1406, 0.0
        %1415 = vadd.xlane.f32.xlu0 %v1414
        %v1416 = vpop.xlane.xlu0 %1415
        %v1417 = vsel %vm1201, %v1407, 0.0
        %1418 = vadd.xlane.f32.xlu0 %v1417
        %v1419 = vpop.xlane.xlu0 %1418
        %v1420 = vsel %vm1201, %v1408, 0.0
        %1421 = vadd.xlane.f32.xlu0 %v1420
        %v1422 = vpop.xlane.xlu0 %1421
        %v1423 = vsel %vm1201, %v1409, 0.0
        %1424 = vadd.xlane.f32.xlu0 %v1423
        %v1425 = vpop.xlane.xlu0 %1424
        %v1426 = vsel %vm1201, %v1410, 0.0
        %1427 = vadd.xlane.f32.xlu0 %v1426
        %v1428 = vpop.xlane.xlu0 %1427
        %v1429 = vsel %vm1201, %v1411, 0.0
        %1430 = vadd.xlane.f32.xlu0 %v1429
        %v1431 = vpop.xlane.xlu0 %1430
        %v1432 = vsel %vm1201, %v1412, 0.0
        %1433 = vadd.xlane.f32.xlu0 %v1432
        %v1434 = vpop.xlane.xlu0 %1433
        %v1435 = vsel %vm1201, %v1413, 0.0
        %1436 = vadd.xlane.f32.xlu0 %v1435
        %v1437 = vpop.xlane.xlu0 %1436
        %s1438 = sld [smem:[#allocation2]]
        %v1439 = vrcp.pop %v1416
        %v1440 = vrcp.pop %v1419
        %v1441 = vrcp.pop %v1422
        %v1442 = vrcp.pop %v1425
        %v1443 = vrcp.pop %v1428
        %v1444 = vrcp.pop %v1431
        %v1445 = vrcp.pop %v1434
        %v1446 = vrcp.pop %v1437
        %v1447 = vstv %s1438
        %v1448 = vmul.f32 %v1447, %v1439
        %v1449 = vmul.f32 %v1447, %v1440
        %v1450 = vmul.f32 %v1447, %v1441
        %v1451 = vmul.f32 %v1447, %v1442
        %v1452 = vmul.f32 %v1447, %v1443
        %v1453 = vmul.f32 %v1447, %v1444
        %v1454 = vmul.f32 %v1447, %v1445
        %v1455 = vmul.f32 %v1447, %v1446
        %v1456 = vadd.f32 %v1382, %v1448
        %v1457 = vadd.f32 %v1383, %v1449
        %v1458 = vadd.f32 %v1384, %v1450
        %v1459 = vadd.f32 %v1385, %v1451
        %v1460 = vadd.f32 %v1386, %v1452
        %v1461 = vadd.f32 %v1387, %v1453
        %v1462 = vadd.f32 %v1388, %v1454
        %v1463 = vadd.f32 %v1389, %v1455
        %v1464 = vsel %vm1398, %v1456, %v1390
        %v1465 = vsel %vm1399, %v1457, %v1391
        %v1466 = vsel %vm1400, %v1458, %v1392
        %v1467 = vsel %vm1401, %v1459, %v1393
        %v1468 = vsel %vm1402, %v1460, %v1394
        %v1469 = vsel %vm1403, %v1461, %v1395
        %v1470 = vsel %vm1404, %v1462, %v1396
        %v1471 = vsel %vm1405, %v1463, %v1397
        %v1472 = vmul.f32 %v1235, %v1464
        %v1473 = vmul.f32 %v1237, %v1465
        %v1474 = vmul.f32 %v1239, %v1466
        %v1475 = vmul.f32 %v1241, %v1467
        %v1476 = vmul.f32 %v1243, %v1468
        %v1477 = vmul.f32 %v1245, %v1469
        %v1478 = vmul.f32 %v1247, %v1470
        %v1479 = vmul.f32 %v1249, %v1471
        %1480 = vst.msk [vmem:[%s159] sm:$0xff] %vm1201, %v1472
        %1481 = vst.msk [vmem:[%s159 + $0x8] sm:$0xff] %vm1201, %v1473
        %1482 = vst.msk [vmem:[%s159 + $0x10] sm:$0xff] %vm1201, %v1474
        %1483 = vst.msk [vmem:[%s159 + $0x18] sm:$0xff] %vm1201, %v1475
        %1484 = vst.msk [vmem:[%s159 + $0x20] sm:$0xff] %vm1201, %v1476
        %1485 = vst.msk [vmem:[%s159 + $0x28] sm:$0xff] %vm1201, %v1477
        %1486 = vst.msk [vmem:[%s159 + $0x30] sm:$0xff] %vm1201, %v1478
        %1487 = vst.msk [vmem:[%s159 + $0x38] sm:$0xff] %vm1201, %v1479
        %s1488 = smul.u32 8, %s14
        %p1489 = scmp.lt.s32.totalorder %s1488, 15
        %s1490 = scalar_select %p1489, %s1488, 15
        %s1491 = smul.addr %s1490, 8
        %s1492 = scalar_lea.vmem %s2, %s1491
        // Predicated region
        $region33: #{tpu_custom_call.1} parent=27 // pred_check
          %p1493 = pneg %p79
        $region34: #{tpu_custom_call.1} parent=27 // pred_check_branch
          %1495 = sbr.rel (%p1493) target = $region36
        $region35: #{tpu_custom_call.1} parent=27 // pred_region
          %s1496 = smul.u32 8, %s14
        $region36: #{tpu_custom_call.1} parent=27 // pred_fallthru
          _
      $region28: #{tpu_custom_call.1} parent=5 // pred_fallthru
        _
      %p1497 = scmp.le.s32.totalorder 2, %s9
      // Predicated region
      $region37: #{tpu_custom_call.1} parent=5 // pred_check
        %p1498 = pneg %p1497
      $region38: #{tpu_custom_call.1} parent=5 // pred_check_branch
        %1500 = sbr.rel (%p1498) target = $region40
      $region39: #{tpu_custom_call.1} parent=5 // pred_region
        %s1501 = ssub.s32 %s9, 2
        // Predicated region
        $region41: #{tpu_custom_call.1} parent=39 // pred_check
          %p1502 = pneg %p85
        $region42: #{tpu_custom_call.1} parent=39 // pred_check_branch
          %1504 = sbr.rel (%p1502) target = $region44
        $region43: #{tpu_custom_call.1} parent=39 // pred_region
          %s1505 = smul.u32 8, %s15
          %p1506 = scmp.lt.s32.totalorder %s1505, 15
          %s1507 = scalar_select %p1506, %s1505, 15
          %s1508 = smul.addr %s1507, 8
          %s1509 = scalar_lea.vmem %s2, %s1508
        $region44: #{tpu_custom_call.1} parent=39 // pred_fallthru
          _
      $region40: #{tpu_custom_call.1} parent=5 // pred_fallthru
        _
    $region6: #{tpu_custom_call.1} parent=1 // loop_footer
      %s13 = sadd.s32 1, %s9
    $region7: #{tpu_custom_call.1} parent=1 // loop_footer_branch
      %8 = sbr.rel target = $region3
    $region8: #{tpu_custom_call.1} parent=1 // loop_exit
      _
    %1510 = vsyncpa [#allocation3], 1
    %s1511 = scalar_lea.sflag [#allocation3], 1
    %1512 = vsyncpa %s1511, 1

</llo_original>
